<compile_context>
chip_gen: v6e
topology: v6e:2x2x1
jax: 0.10.0
libtpu: 0.0.40
codegen_flags: <defaults>
</compile_context>

<pallas_src>
import jax
import jax.numpy as jnp
from jax.experimental import pallas as pl
from jax.experimental.pallas import tpu as pltpu


def _round_up(x, m):
    return ((x + m - 1) // m) * m


def siamese_kernel(x_ref, wb_ref, proto_ref, bb_ref, w1_ref, b1_ref,
                   w2_ref, b2_ref, out_ref, acc_ref):
    """One K-tile of the base Linear; Siamese distance + fc head in epilogue."""
    k = pl.program_id(0)

    @pl.when(k == 0)
    def _init():
        acc_ref[...] = jnp.zeros_like(acc_ref)

    # base_network matmul chunk: [B, tk] x [tk, 512] on the MXU (bf16 in, f32 acc).
    acc_ref[...] += jnp.dot(x_ref[...], wb_ref[...],
                            preferred_element_type=jnp.float32)

    @pl.when(k == pl.num_programs(0) - 1)
    def _epilogue():
        # base_network: + bias, ReLU (f32, VPU).
        feat = jnp.maximum(acc_ref[...] + bb_ref[...], 0.0)
        # Siamese distance: |feature1 - prototype| (f32, VPU).
        d = jnp.abs(feat - proto_ref[...])
        # fc head: Linear(512 -> 128) + ReLU (bf16 MXU, f32 accumulate).
        h = jnp.dot(d.astype(jnp.bfloat16), w1_ref[...],
                    preferred_element_type=jnp.float32) + b1_ref[...]
        h = jnp.maximum(h, 0.0)
        # Linear(128 -> 1): N=1 is MXU-hostile -> VPU multiply + lane reduce.
        logits = jnp.sum(h * w2_ref[...], axis=-1, keepdims=True) + b2_ref[...]
        out_ref[...] = jax.nn.sigmoid(logits)


def siamese_forward(img1, prototype, params, *, tk=512):
    """img1: [B, C, H, W] f32, prototype: [B, 512] f32 -> similarity [B, 1] f32."""
    B = img1.shape[0]
    x = img1.reshape(B, -1)                    # flatten NCHW -> [B, C*H*W]
    K = x.shape[1]

    wb, bb, w1, b1, w2, b2 = params

    # ---- pad to TPU-friendly shapes ------------------------------------
    b_pad = max(8, _round_up(B, 8))            # at least one sublane of rows
    k_lane = _round_up(K, 128)                 # K rounded to a lane multiple
    tk = max(128, _round_up(min(tk, k_lane), 128))   # tile is a lane multiple
    k_pad = _round_up(k_lane, tk)
    nk = k_pad // tk

    # bf16 for everything feeding the MXU; zero padding does not change the
    # result (zero K contributions; extra batch rows are sliced off below).
    x_p = jnp.zeros((b_pad, k_pad), jnp.bfloat16).at[:B, :K].set(
        x.astype(jnp.bfloat16))
    wb_p = jnp.zeros((k_pad, 512), jnp.bfloat16).at[:K, :].set(
        wb.astype(jnp.bfloat16))
    proto_p = jnp.zeros((b_pad, 512), jnp.float32).at[:B, :].set(
        prototype.astype(jnp.float32))
    bb_p = bb.reshape(1, 512).astype(jnp.float32)
    w1_b = w1.astype(jnp.bfloat16)
    b1_p = b1.reshape(1, 128).astype(jnp.float32)
    w2_row = w2.reshape(1, 128).astype(jnp.float32)   # (128,1) -> row for VPU reduce
    b2_p = b2.reshape(1, 1).astype(jnp.float32)

    grid_spec = pltpu.PrefetchScalarGridSpec(
        num_scalar_prefetch=0,
        grid=(nk,),
        in_specs=[
            pl.BlockSpec((b_pad, tk), lambda k: (0, k)),    # x K-tile (streamed)
            pl.BlockSpec((tk, 512), lambda k: (k, 0)),      # wb K-tile (streamed)
            pl.BlockSpec((b_pad, 512), lambda k: (0, 0)),   # prototype (resident)
            pl.BlockSpec((1, 512), lambda k: (0, 0)),       # bb
            pl.BlockSpec((512, 128), lambda k: (0, 0)),     # w1
            pl.BlockSpec((1, 128), lambda k: (0, 0)),       # b1
            pl.BlockSpec((1, 128), lambda k: (0, 0)),       # w2 (as a row)
            pl.BlockSpec((1, 1), lambda k: (0, 0)),         # b2
        ],
        out_specs=pl.BlockSpec((b_pad, 1), lambda k: (0, 0)),
        scratch_shapes=[pltpu.VMEM((b_pad, 512), jnp.float32)],  # f32 accumulator
    )

    # Cost hint for XLA's scheduler (matmuls dominate; sigmoid ~ B transcendentals).
    flops = 2 * b_pad * (k_pad * 512 + 512 * 128 + 128)
    bytes_accessed = (x_p.size * 2 + wb_p.size * 2 + proto_p.size * 4
                      + w1_b.size * 2 + bb_p.size * 4 + b1_p.size * 4
                      + w2_row.size * 4 + b2_p.size * 4 + b_pad * 4)
    cost = pl.CostEstimate(flops=flops, transcendentals=b_pad,
                           bytes_accessed=bytes_accessed)

    # Scoped VMEM: double-buffered bf16 x/wb tiles + resident f32 accumulator,
    # prototype and head weights, with 2x headroom.  Capped at 64 MiB so the
    # same code is safe on v7x (64 MiB physical VMEM).
    tile_bytes = (2 * (b_pad * tk * 2 + tk * 512 * 2)      # streamed tiles
                  + b_pad * 512 * 4                        # accumulator
                  + proto_p.size * 4 + w1_b.size * 2 + 8192)
    vmem_limit = min(64 * 1024 * 1024, max(32 * 1024 * 1024, 2 * tile_bytes))

    out = pl.pallas_call(
        siamese_kernel,
        out_shape=jax.ShapeDtypeStruct((b_pad, 1), jnp.float32),
        grid_spec=grid_spec,
        compiler_params=pltpu.CompilerParams(
            dimension_semantics=("arbitrary",),            # K is a reduction axis
            vmem_limit_bytes=int(vmem_limit)),
        cost_estimate=cost,
    )(x_p, wb_p, proto_p, bb_p, w1_b, b1_p, w2_row, b2_p)

    return out[:B]


def init_params(key, in_features):
    """Deterministic parameter init (shapes follow the PyTorch module)."""
    k = jax.random.split(key, 6)
    # base_network: Linear(in_features, 512)
    wb = jax.random.normal(k[0], (in_features, 512), jnp.float32) * 0.02
    bb = jax.random.normal(k[1], (1, 512), jnp.float32) * 0.02
    # fc: Linear(512, 128)
    w1 = jax.random.normal(k[2], (512, 128), jnp.float32) * 0.05
    b1 = jax.random.normal(k[3], (1, 128), jnp.float32) * 0.05
    # fc: Linear(128, 1)
    w2 = jax.random.normal(k[4], (128, 1), jnp.float32) * 0.1
    b2 = jax.random.normal(k[5], (1, 1), jnp.float32) * 0.1
    return (wb, bb, w1, b1, w2, b2)


def siamese_reference(img1, prototype, params):
    """Pure-JAX f32 reference of the same forward pass (for validation)."""
    wb, bb, w1, b1, w2, b2 = params
    x = img1.reshape(img1.shape[0], -1)
    feat = jnp.maximum(x @ wb + bb, 0.0)
    d = jnp.abs(feat - prototype)
    h = jnp.maximum(d @ w1 + b1, 0.0)
    return jax.nn.sigmoid(h @ w2 + b2)


if __name__ == "__main__":
    key = jax.random.PRNGKey(0)
    k_img, k_proto, k_params = jax.random.split(key, 3)

    # Small shapes consistent with the forward: batch=2, channels=4, spatial=16.
    B, C, H, W = 2, 4, 16, 16
    img1 = jax.random.normal(k_img, (B, C, H, W), jnp.float32)
    prototype = jax.random.normal(k_proto, (B, 512), jnp.float32)

    params = init_params(k_params, C * H * W)

    sim = siamese_forward(img1, prototype, params)
    sim = jax.block_until_ready(sim)

    assert sim.shape == (B, 1)
    assert bool(jnp.all(jnp.isfinite(sim)))
    assert bool(jnp.all((sim >= 0.0) & (sim <= 1.0)))  # sigmoid range

    # Numerical check against the f32 reference (loose tol for bf16 matmuls).
    ref = siamese_reference(img1, prototype, params)
    assert bool(jnp.allclose(sim, ref, atol=5e-2, rtol=0.0))

    print("KERNEL_OK")
</pallas_src>

<mosaic_0001>
module attributes {stable_mosaic.version = 11 : i64} {
  func.func @siamese_kernel(%arg0: i32, %arg1: memref<8x512xbf16, #tpu.memory_space<vmem>>, %arg2: memref<512x512xbf16, #tpu.memory_space<vmem>>, %arg3: memref<8x512xf32, #tpu.memory_space<vmem>>, %arg4: memref<1x512xf32, #tpu.memory_space<vmem>>, %arg5: memref<512x128xbf16, #tpu.memory_space<vmem>>, %arg6: memref<1x128xf32, #tpu.memory_space<vmem>>, %arg7: memref<1x128xf32, #tpu.memory_space<vmem>>, %arg8: memref<1x1xf32, #tpu.memory_space<vmem>>, %arg9: memref<8x1xf32, #tpu.memory_space<vmem>>, %arg10: memref<8x512xf32, #tpu.memory_space<vmem>>) attributes {dimension_semantics = [#tpu.dimension_semantics<arbitrary>], iteration_bounds = array<i64: 2>, scalar_prefetch = 0 : i64, scratch_operands = 1 : i64, tpu.core_type = #tpu.core_type<tc>, window_params = [{transform_indices = @transform_0, window_bounds = array<i64: 8, 512>}, {transform_indices = @transform_1, window_bounds = array<i64: 512, 512>}, {pipeline_mode = #tpu.pipeline_mode<synchronous>, transform_indices = @transform_2, window_bounds = array<i64: 8, 512>}, {pipeline_mode = #tpu.pipeline_mode<synchronous>, transform_indices = @transform_3, window_bounds = array<i64: 1, 512>}, {pipeline_mode = #tpu.pipeline_mode<synchronous>, transform_indices = @transform_4, window_bounds = array<i64: 512, 128>}, {pipeline_mode = #tpu.pipeline_mode<synchronous>, transform_indices = @transform_5, window_bounds = array<i64: 1, 128>}, {pipeline_mode = #tpu.pipeline_mode<synchronous>, transform_indices = @transform_6, window_bounds = array<i64: 1, 128>}, {pipeline_mode = #tpu.pipeline_mode<synchronous>, transform_indices = @transform_7, window_bounds = array<i64: 1, 1>}, {pipeline_mode = #tpu.pipeline_mode<synchronous>, transform_indices = @transform_8, window_bounds = array<i64: 8, 1>}]} {
    %c0_i32 = arith.constant 0 : i32
    %0 = arith.cmpi eq, %arg0, %c0_i32 : i32
    %1 = arith.extui %0 : i1 to i32
    %c0_i32_0 = arith.constant 0 : i32
    %2 = arith.cmpi ne, %1, %c0_i32_0 : i32
    scf.if %2 {
      %cst_9 = arith.constant 0.000000e+00 : f32
      %12 = vector.broadcast %cst_9 : f32 to vector<8x512xf32>
      %c0_10 = arith.constant 0 : index
      %c0_11 = arith.constant 0 : index
      %13 = vector.load %arg10[%c0_10, %c0_11] : memref<8x512xf32, #tpu.memory_space<vmem>>, vector<8x512xf32>
      tpu.vector_store %arg10[%c0_10, %c0_11], %12 {strides = array<i32>} : memref<8x512xf32, #tpu.memory_space<vmem>>, vector<8x512xf32>,
    } else {
    }
    %c0 = arith.constant 0 : index
    %c0_1 = arith.constant 0 : index
    %3 = vector.load %arg10[%c0, %c0_1] : memref<8x512xf32, #tpu.memory_space<vmem>>, vector<8x512xf32>
    %c0_2 = arith.constant 0 : index
    %c0_3 = arith.constant 0 : index
    %4 = vector.load %arg1[%c0_2, %c0_3] : memref<8x512xbf16, #tpu.memory_space<vmem>>, vector<8x512xbf16>
    %c0_4 = arith.constant 0 : index
    %c0_5 = arith.constant 0 : index
    %5 = vector.load %arg2[%c0_4, %c0_5] : memref<512x512xbf16, #tpu.memory_space<vmem>>, vector<512x512xbf16>
    %cst = arith.constant dense<0.000000e+00> : vector<8x512xf32>
    %6 = tpu.matmul %4, %5, %cst {dimension_numbers = #tpu.dot_dimension_numbers<[1], [0], [0], [1], [0, 0, 1, 1], [], []>} : vector<8x512xbf16>, vector<512x512xbf16>, vector<8x512xf32> -> vector<8x512xf32>
    %7 = arith.addf %3, %6 : vector<8x512xf32>
    %c0_6 = arith.constant 0 : index
    %c0_7 = arith.constant 0 : index
    %8 = vector.load %arg10[%c0_6, %c0_7] : memref<8x512xf32, #tpu.memory_space<vmem>>, vector<8x512xf32>
    tpu.vector_store %arg10[%c0_6, %c0_7], %7 {strides = array<i32>} : memref<8x512xf32, #tpu.memory_space<vmem>>, vector<8x512xf32>,
    %c1_i32 = arith.constant 1 : i32
    %9 = arith.cmpi eq, %arg0, %c1_i32 : i32
    %10 = arith.extui %9 : i1 to i32
    %c0_i32_8 = arith.constant 0 : i32
    %11 = arith.cmpi ne, %10, %c0_i32_8 : i32
    scf.if %11 {
      %c0_9 = arith.constant 0 : index
      %c0_10 = arith.constant 0 : index
      %12 = vector.load %arg10[%c0_9, %c0_10] : memref<8x512xf32, #tpu.memory_space<vmem>>, vector<8x512xf32>
      %c0_11 = arith.constant 0 : index
      %c0_12 = arith.constant 0 : index
      %13 = vector.load %arg4[%c0_11, %c0_12] : memref<1x512xf32, #tpu.memory_space<vmem>>, vector<1x512xf32>
      %14 = vector.broadcast %13 : vector<1x512xf32> to vector<8x512xf32>
      %15 = arith.addf %12, %14 : vector<8x512xf32>
      %cst_13 = arith.constant 0.000000e+00 : f32
      %16 = vector.broadcast %cst_13 : f32 to vector<8x512xf32>
      %17 = arith.maximumf %15, %16 : vector<8x512xf32>
      %c0_14 = arith.constant 0 : index
      %c0_15 = arith.constant 0 : index
      %18 = vector.load %arg3[%c0_14, %c0_15] : memref<8x512xf32, #tpu.memory_space<vmem>>, vector<8x512xf32>
      %19 = arith.subf %17, %18 : vector<8x512xf32>
      %20 = math.absf %19 : vector<8x512xf32>
      %21 = arith.truncf %20 : vector<8x512xf32> to vector<8x512xbf16>
      %c0_16 = arith.constant 0 : index
      %c0_17 = arith.constant 0 : index
      %22 = vector.load %arg5[%c0_16, %c0_17] : memref<512x128xbf16, #tpu.memory_space<vmem>>, vector<512x128xbf16>
      %cst_18 = arith.constant dense<0.000000e+00> : vector<8x128xf32>
      %23 = tpu.matmul %21, %22, %cst_18 {dimension_numbers = #tpu.dot_dimension_numbers<[1], [0], [0], [1], [0, 0, 1, 1], [], []>} : vector<8x512xbf16>, vector<512x128xbf16>, vector<8x128xf32> -> vector<8x128xf32>
      %c0_19 = arith.constant 0 : index
      %c0_20 = arith.constant 0 : index
      %24 = vector.load %arg6[%c0_19, %c0_20] : memref<1x128xf32, #tpu.memory_space<vmem>>, vector<1x128xf32>
      %25 = vector.broadcast %24 : vector<1x128xf32> to vector<8x128xf32>
      %26 = arith.addf %23, %25 : vector<8x128xf32>
      %cst_21 = arith.constant 0.000000e+00 : f32
      %27 = vector.broadcast %cst_21 : f32 to vector<8x128xf32>
      %28 = arith.maximumf %26, %27 : vector<8x128xf32>
      %c0_22 = arith.constant 0 : index
      %c0_23 = arith.constant 0 : index
      %29 = vector.load %arg7[%c0_22, %c0_23] : memref<1x128xf32, #tpu.memory_space<vmem>>, vector<1x128xf32>
      %30 = vector.broadcast %29 : vector<1x128xf32> to vector<8x128xf32>
      %31 = arith.mulf %28, %30 : vector<8x128xf32>
      %cst_24 = arith.constant dense<0.000000e+00> : vector<8xf32>
      %32 = vector.multi_reduction <add>, %31, %cst_24 [1] : vector<8x128xf32> to vector<8xf32>
      %33 = vector.shape_cast %32 : vector<8xf32> to vector<8x1xf32>
      %c0_25 = arith.constant 0 : index
      %c0_26 = arith.constant 0 : index
      %34 = vector.load %arg8[%c0_25, %c0_26] : memref<1x1xf32, #tpu.memory_space<vmem>>, vector<1x1xf32>
      %35 = vector.broadcast %34 : vector<1x1xf32> to vector<8x1xf32>
      %36 = arith.addf %33, %35 : vector<8x1xf32>
      %37 = arith.negf %36 : vector<8x1xf32>
      %38 = math.exp %37 : vector<8x1xf32>
      %cst_27 = arith.constant 1.000000e+00 : f32
      %39 = vector.broadcast %cst_27 : f32 to vector<8x1xf32>
      %40 = arith.addf %39, %38 : vector<8x1xf32>
      %41 = arith.divf %39, %40 : vector<8x1xf32>
      %c0_28 = arith.constant 0 : index
      %c0_29 = arith.constant 0 : index
      %42 = vector.load %arg9[%c0_28, %c0_29] : memref<8x1xf32, #tpu.memory_space<vmem>>, vector<8x1xf32>
      tpu.vector_store %arg9[%c0_28, %c0_29], %41 {strides = array<i32>} : memref<8x1xf32, #tpu.memory_space<vmem>>, vector<8x1xf32>,
    } else {
    }
    return
  }
  func.func @transform_0(%arg0: i32) -> (i32, i32) {
    %c0_i32 = arith.constant 0 : i32
    %c0_i32_0 = arith.constant 0 : i32
    return %c0_i32, %arg0 : i32, i32
  }
  func.func @transform_1(%arg0: i32) -> (i32, i32) {
    %c0_i32 = arith.constant 0 : i32
    %c0_i32_0 = arith.constant 0 : i32
    return %arg0, %c0_i32 : i32, i32
  }
  func.func @transform_2(%arg0: i32) -> (i32, i32) {
    %c0_i32 = arith.constant 0 : i32
    %c0_i32_0 = arith.constant 0 : i32
    %c0_i32_1 = arith.constant 0 : i32
    return %c0_i32, %c0_i32_0 : i32, i32
  }
  func.func @transform_3(%arg0: i32) -> (i32, i32) {
    %c0_i32 = arith.constant 0 : i32
    %c0_i32_0 = arith.constant 0 : i32
    %c0_i32_1 = arith.constant 0 : i32
    return %c0_i32, %c0_i32_0 : i32, i32
  }
  func.func @transform_4(%arg0: i32) -> (i32, i32) {
    %c0_i32 = arith.constant 0 : i32
    %c0_i32_0 = arith.constant 0 : i32
    %c0_i32_1 = arith.constant 0 : i32
    return %c0_i32, %c0_i32_0 : i32, i32
  }
  func.func @transform_5(%arg0: i32) -> (i32, i32) {
    %c0_i32 = arith.constant 0 : i32
    %c0_i32_0 = arith.constant 0 : i32
    %c0_i32_1 = arith.constant 0 : i32
    return %c0_i32, %c0_i32_0 : i32, i32
  }
  func.func @transform_6(%arg0: i32) -> (i32, i32) {
    %c0_i32 = arith.constant 0 : i32
    %c0_i32_0 = arith.constant 0 : i32
    %c0_i32_1 = arith.constant 0 : i32
    return %c0_i32, %c0_i32_0 : i32, i32
  }
  func.func @transform_7(%arg0: i32) -> (i32, i32) {
    %c0_i32 = arith.constant 0 : i32
    %c0_i32_0 = arith.constant 0 : i32
    %c0_i32_1 = arith.constant 0 : i32
    return %c0_i32, %c0_i32_0 : i32, i32
  }
  func.func @transform_8(%arg0: i32) -> (i32, i32) {
    %c0_i32 = arith.constant 0 : i32
    %c0_i32_0 = arith.constant 0 : i32
    %c0_i32_1 = arith.constant 0 : i32
    return %c0_i32, %c0_i32_0 : i32, i32
  }
}

</mosaic_0001>

<llo_original>
// kernel: tpu_custom_call.1
$region0: #{tpu_custom_call.1}
  #allocation0 [shape = 'u32[]', space=smem, size = 0x4, offset = 0x4, fixed_abs, tag = 'smem constant byte address 0x4 - core index']
  #allocation1 [shape = 'u32[144,128]{1,0:T(1,128)}', space=vmem, size = 0x12000, scoped, tag = 'internal scratch']
  #allocation2 [shape = 'f32[8,512]{1,0:T(8,128)}', space=vmem, size = 0x4000, scoped, tag = 'scratch operand']
  #allocation3 [shape = 'f32[1,1]{1,0:T(1,128)S(1)}', space=vmem, size = 0x200, scoped, tag = 'scoped memory for tpu_custom_call.1']
  %s0 = inlined_call_operand.hbm [shape: bf16[8,1024], index: 0, kind: input, shape index: {}]
  %s1 = inlined_call_operand.hbm [shape: bf16[1024,512], index: 1, kind: input, shape index: {}]
  %s2 = inlined_call_operand.hbm [shape: f32[8,512], index: 2, kind: input, shape index: {}]
  %s3 = inlined_call_operand.vmem [shape: f32[1,512], index: 3, kind: input, shape index: {}]
  %s4 = inlined_call_operand.hbm [shape: bf16[512,128], index: 4, kind: input, shape index: {}]
  %s5 = inlined_call_operand.vmem [shape: f32[1,128], index: 5, kind: input, shape index: {}]
  %s6 = inlined_call_operand.vmem [shape: f32[1,128], index: 6, kind: input, shape index: {}]
  %s7 = inlined_call_operand.<no memory space> [shape: f32[1,1], index: 7, kind: input, shape index: {}]
  %s8 = inlined_call_operand.vmem [shape: f32[8,1], index: 8, kind: output, shape index: {}]
  %s9 = sld [smem:[#allocation0]]
  $region89: #{tpu_custom_call.1} parent=0
    _
  %s11 = ssub.s32 1, %s9
  %s12 = scalar_select 0, %s11, %s9
  %v13 = vstv %s7
  %14 = vst [vmem:[#allocation3] sm:$0x1] %v13
  $region1: #{tpu_custom_call.1} parent=0
    #allocation4 [shape = 'u8[16384]{0}', space=vmem, size = 0x4000, scoped, tag = 'input window, operand 0']
    #allocation5 [shape = 's32[2]{0}', space=sflag, size = 0x8, scoped, tag = 'scoped memory for tpu_custom_call.1']
    #allocation6 [shape = 'u8[1048576]{0}', space=vmem, size = 0x100000, scoped, tag = 'input window, operand 1']
    #allocation7 [shape = 's32[2]{0}', space=sflag, size = 0x8, scoped, tag = 'scoped memory for tpu_custom_call.1']
    #allocation8 [shape = 'u8[16384]{0}', space=vmem, size = 0x4000, scoped, tag = 'input window, operand 2, single buffered']
    #allocation9 [shape = 'u8[131072]{0}', space=vmem, size = 0x20000, scoped, tag = 'input window, operand 4, single buffered']
    #allocation10 [shape = 's32[1]{0}', space=sflag, size = 0x4, scoped, tag = 'scoped memory for tpu_custom_call.1']
    %15 = vsyncpa [#allocation5], 0
    %s16 = scalar_lea.sflag [#allocation5], 1
    %17 = vsyncpa %s16, 0
    %18 = vsyncpa [#allocation7], 0
    %s19 = scalar_lea.sflag [#allocation7], 1
    %20 = vsyncpa %s19, 0
    %21 = vsyncpa [#allocation10], 0
    loop: start=0, step=1, limit=4
    $region2: #{tpu_custom_call.1} parent=1 // loop_pre_header
      _
    $region3: #{tpu_custom_call.1} parent=1 // loop_header
      %s23 = sphi 0, %s27
      %p24 = scmp.ge.s32.totalorder %s23, 4
      %s33 = sphi 0, %s35
      %s36 = sphi 0, %s33
      %s37 = sphi 0, %s36
      %s53 = sphi 0, %s37
      %s59 = sphi 0, %s61
      %s62 = sphi 0, %s59
      %s63 = sphi 0, %s62
      %s79 = sphi 0, %s63
      %s83 = sphi 0, %s83
      %s85 = sphi 0, %s83
      %s86 = sphi 0, %s85
      %s100 = sphi 0, %s86
      %s104 = sphi 0, %s104
      %s106 = sphi 0, %s104
      %s107 = sphi 0, %s106
      %s121 = sphi 0, %s107
      %s125 = sphi 0, %s125
      %s127 = sphi 0, %s125
      %s128 = sphi 0, %s127
      %s142 = sphi 0, %s128
      %s146 = sphi 0, %s146
      %s148 = sphi 0, %s146
      %s149 = sphi 0, %s148
      %s163 = sphi 0, %s149
      %s167 = sphi 0, %s167
      %s169 = sphi 0, %s167
      %s170 = sphi 0, %s169
      %s184 = sphi 0, %s170
      %s188 = sphi 0, %s188
      %s190 = sphi 0, %s188
      %s191 = sphi 0, %s190
      %s205 = sphi 0, %s191
      %s209 = sphi 0, %s209
      %s211 = sphi 0, %s209
      %s212 = sphi 0, %s211
      %s226 = sphi 0, %s212
    $region4: #{tpu_custom_call.1} parent=1 // loop_header_branch
      %26 = sbr.rel (%p24) target = $region8
    $region5: #{tpu_custom_call.1} parent=1 // loop_body
      %s28 = ssub.s32 %s23, 1
      %s29 = ssub.s32 %s23, 2
      %s30 = sadd.s32 %s23, 1
      %s31 = ssub.s32 %s23, %s30
      %p32 = scmp.eq.s32.totalorder %s31, 0
      %s34 = sadd.s32 %s33, 1
      %s35 = scalar_select %p32, %s33, %s34
      %p38 = pneg %p32
      %p39 = scmp.eq.s32.totalorder %s23, 1
      %p40 = por %p38, %p39
      %p41 = scmp.ne.s32.totalorder %s33, %s36
      %p42 = scmp.eq.s32.totalorder %s23, 0
      %p43 = por %p41, %p42
      %p44 = scmp.ne.s32.totalorder %s33, %s36
      %p45 = scmp.eq.s32.totalorder %s28, 1
      %p46 = por %p44, %p45
      %p47 = scmp.ne.s32.totalorder %s36, %s37
      %p48 = scmp.eq.s32.totalorder %s28, 0
      %p49 = por %p47, %p48
      %p50 = scmp.ne.s32.totalorder %s36, %s37
      %p51 = scmp.eq.s32.totalorder %s29, 1
      %p52 = por %p50, %p51
      %p54 = scmp.ne.s32.totalorder %s37, %s53
      %p55 = scmp.eq.s32.totalorder %s29, 0
      %p56 = por %p54, %p55
      %s57 = ssub.s32 %s23, %s30
      %p58 = scmp.eq.s32.totalorder %s57, 0
      %s60 = sadd.s32 %s59, 1
      %s61 = scalar_select %p58, %s59, %s60
      %p64 = pneg %p58
      %p65 = scmp.eq.s32.totalorder %s23, 1
      %p66 = por %p64, %p65
      %p67 = scmp.ne.s32.totalorder %s59, %s62
      %p68 = scmp.eq.s32.totalorder %s23, 0
      %p69 = por %p67, %p68
      %p70 = scmp.ne.s32.totalorder %s59, %s62
      %p71 = scmp.eq.s32.totalorder %s28, 1
      %p72 = por %p70, %p71
      %p73 = scmp.ne.s32.totalorder %s62, %s63
      %p74 = scmp.eq.s32.totalorder %s28, 0
      %p75 = por %p73, %p74
      %p76 = scmp.ne.s32.totalorder %s62, %s63
      %p77 = scmp.eq.s32.totalorder %s29, 1
      %p78 = por %p76, %p77
      %p80 = scmp.ne.s32.totalorder %s63, %s79
      %p81 = scmp.eq.s32.totalorder %s29, 0
      %p82 = por %p80, %p81
      %s84 = sadd.s32 %s83, 1
      %p87 = scmp.eq.s32.totalorder %s23, 1
      %p88 = scmp.ne.s32.totalorder %s83, %s85
      %p89 = scmp.eq.s32.totalorder %s23, 0
      %p90 = por %p88, %p89
      %p91 = scmp.ne.s32.totalorder %s83, %s85
      %p92 = scmp.eq.s32.totalorder %s28, 1
      %p93 = por %p91, %p92
      %p94 = scmp.ne.s32.totalorder %s85, %s86
      %p95 = scmp.eq.s32.totalorder %s28, 0
      %p96 = por %p94, %p95
      %p97 = scmp.ne.s32.totalorder %s85, %s86
      %p98 = scmp.eq.s32.totalorder %s29, 1
      %p99 = por %p97, %p98
      %p101 = scmp.ne.s32.totalorder %s86, %s100
      %p102 = scmp.eq.s32.totalorder %s29, 0
      %p103 = por %p101, %p102
      %s105 = sadd.s32 %s104, 1
      %p108 = scmp.eq.s32.totalorder %s23, 1
      %p109 = scmp.ne.s32.totalorder %s104, %s106
      %p110 = scmp.eq.s32.totalorder %s23, 0
      %p111 = por %p109, %p110
      %p112 = scmp.ne.s32.totalorder %s104, %s106
      %p113 = scmp.eq.s32.totalorder %s28, 1
      %p114 = por %p112, %p113
      %p115 = scmp.ne.s32.totalorder %s106, %s107
      %p116 = scmp.eq.s32.totalorder %s28, 0
      %p117 = por %p115, %p116
      %p118 = scmp.ne.s32.totalorder %s106, %s107
      %p119 = scmp.eq.s32.totalorder %s29, 1
      %p120 = por %p118, %p119
      %p122 = scmp.ne.s32.totalorder %s107, %s121
      %p123 = scmp.eq.s32.totalorder %s29, 0
      %p124 = por %p122, %p123
      %s126 = sadd.s32 %s125, 1
      %p129 = scmp.eq.s32.totalorder %s23, 1
      %p130 = scmp.ne.s32.totalorder %s125, %s127
      %p131 = scmp.eq.s32.totalorder %s23, 0
      %p132 = por %p130, %p131
      %p133 = scmp.ne.s32.totalorder %s125, %s127
      %p134 = scmp.eq.s32.totalorder %s28, 1
      %p135 = por %p133, %p134
      %p136 = scmp.ne.s32.totalorder %s127, %s128
      %p137 = scmp.eq.s32.totalorder %s28, 0
      %p138 = por %p136, %p137
      %p139 = scmp.ne.s32.totalorder %s127, %s128
      %p140 = scmp.eq.s32.totalorder %s29, 1
      %p141 = por %p139, %p140
      %p143 = scmp.ne.s32.totalorder %s128, %s142
      %p144 = scmp.eq.s32.totalorder %s29, 0
      %p145 = por %p143, %p144
      %s147 = sadd.s32 %s146, 1
      %p150 = scmp.eq.s32.totalorder %s23, 1
      %p151 = scmp.ne.s32.totalorder %s146, %s148
      %p152 = scmp.eq.s32.totalorder %s23, 0
      %p153 = por %p151, %p152
      %p154 = scmp.ne.s32.totalorder %s146, %s148
      %p155 = scmp.eq.s32.totalorder %s28, 1
      %p156 = por %p154, %p155
      %p157 = scmp.ne.s32.totalorder %s148, %s149
      %p158 = scmp.eq.s32.totalorder %s28, 0
      %p159 = por %p157, %p158
      %p160 = scmp.ne.s32.totalorder %s148, %s149
      %p161 = scmp.eq.s32.totalorder %s29, 1
      %p162 = por %p160, %p161
      %p164 = scmp.ne.s32.totalorder %s149, %s163
      %p165 = scmp.eq.s32.totalorder %s29, 0
      %p166 = por %p164, %p165
      %s168 = sadd.s32 %s167, 1
      %p171 = scmp.eq.s32.totalorder %s23, 1
      %p172 = scmp.ne.s32.totalorder %s167, %s169
      %p173 = scmp.eq.s32.totalorder %s23, 0
      %p174 = por %p172, %p173
      %p175 = scmp.ne.s32.totalorder %s167, %s169
      %p176 = scmp.eq.s32.totalorder %s28, 1
      %p177 = por %p175, %p176
      %p178 = scmp.ne.s32.totalorder %s169, %s170
      %p179 = scmp.eq.s32.totalorder %s28, 0
      %p180 = por %p178, %p179
      %p181 = scmp.ne.s32.totalorder %s169, %s170
      %p182 = scmp.eq.s32.totalorder %s29, 1
      %p183 = por %p181, %p182
      %p185 = scmp.ne.s32.totalorder %s170, %s184
      %p186 = scmp.eq.s32.totalorder %s29, 0
      %p187 = por %p185, %p186
      %s189 = sadd.s32 %s188, 1
      %p192 = scmp.eq.s32.totalorder %s23, 1
      %p193 = scmp.ne.s32.totalorder %s188, %s190
      %p194 = scmp.eq.s32.totalorder %s23, 0
      %p195 = por %p193, %p194
      %p196 = scmp.ne.s32.totalorder %s188, %s190
      %p197 = scmp.eq.s32.totalorder %s28, 1
      %p198 = por %p196, %p197
      %p199 = scmp.ne.s32.totalorder %s190, %s191
      %p200 = scmp.eq.s32.totalorder %s28, 0
      %p201 = por %p199, %p200
      %p202 = scmp.ne.s32.totalorder %s190, %s191
      %p203 = scmp.eq.s32.totalorder %s29, 1
      %p204 = por %p202, %p203
      %p206 = scmp.ne.s32.totalorder %s191, %s205
      %p207 = scmp.eq.s32.totalorder %s29, 0
      %p208 = por %p206, %p207
      %s210 = sadd.s32 %s209, 1
      %p213 = scmp.eq.s32.totalorder %s23, 1
      %p214 = scmp.ne.s32.totalorder %s209, %s211
      %p215 = scmp.eq.s32.totalorder %s23, 0
      %p216 = por %p214, %p215
      %p217 = scmp.ne.s32.totalorder %s209, %s211
      %p218 = scmp.eq.s32.totalorder %s28, 1
      %p219 = por %p217, %p218
      %p220 = scmp.ne.s32.totalorder %s211, %s212
      %p221 = scmp.eq.s32.totalorder %s28, 0
      %p222 = por %p220, %p221
      %p223 = scmp.ne.s32.totalorder %s211, %s212
      %p224 = scmp.eq.s32.totalorder %s29, 1
      %p225 = por %p223, %p224
      %p227 = scmp.ne.s32.totalorder %s212, %s226
      %p228 = scmp.eq.s32.totalorder %s29, 0
      %p229 = por %p227, %p228
      %p230 = scmp.le.s32.totalorder 1, %s23
      %p231 = scmp.lt.s32.totalorder %s23, 3
      %p232 = pnand %p230, %p231
      %p233 = pneg %p232
      // Predicated region
      $region9: #{tpu_custom_call.1} parent=5 // pred_check
        _
      $region10: #{tpu_custom_call.1} parent=5 // pred_check_branch
        %235 = sbr.rel (%p232) target = $region12
      $region11: #{tpu_custom_call.1} parent=5 // pred_region
        %s236 = ssub.s32 %s23, 1
        // Predicated region
        $region13: #{tpu_custom_call.1} parent=11 // pred_check
          %p237 = pneg %p96
        $region14: #{tpu_custom_call.1} parent=11 // pred_check_branch
          %239 = sbr.rel (%p237) target = $region16
        $region15: #{tpu_custom_call.1} parent=11 // pred_region
          %s241 = ssub.s32 512, 512
          %242 = vsyncadd [#allocation7], %s241
          %s244 = sshll.u32 [#allocation8], 4
          %s245 = int_to_ptr.vmem [resolvable:$true] %s244
          %247 = dma.hbm_to_vmem [thread:$0]  %s2, 512, %s245, [#allocation7]
        $region16: #{tpu_custom_call.1} parent=11 // pred_fallthru
          _
        // Predicated region
        $region17: #{tpu_custom_call.1} parent=11 // pred_check
          %p248 = pneg %p117
        $region18: #{tpu_custom_call.1} parent=11 // pred_check_branch
          %250 = sbr.rel (%p248) target = $region20
        $region19: #{tpu_custom_call.1} parent=11 // pred_region
          _
        $region20: #{tpu_custom_call.1} parent=11 // pred_fallthru
          _
        // Predicated region
        $region21: #{tpu_custom_call.1} parent=11 // pred_check
          %p251 = pneg %p138
        $region22: #{tpu_custom_call.1} parent=11 // pred_check_branch
          %253 = sbr.rel (%p251) target = $region24
        $region23: #{tpu_custom_call.1} parent=11 // pred_region
          %s255 = ssub.s32 4096, 4096
          %256 = vsyncadd [#allocation10], %s255
          %s257 = sshll.u32 [#allocation9], 4
          %s258 = int_to_ptr.vmem [resolvable:$true] %s257
          %263 = dma.hbm_to_vmem [thread:$0]  %s4, 4096, %s258, [#allocation10], 64, 64, 4
        $region24: #{tpu_custom_call.1} parent=11 // pred_fallthru
          _
        // Predicated region
        $region25: #{tpu_custom_call.1} parent=11 // pred_check
          %p264 = pneg %p159
        $region26: #{tpu_custom_call.1} parent=11 // pred_check_branch
          %266 = sbr.rel (%p264) target = $region28
        $region27: #{tpu_custom_call.1} parent=11 // pred_region
          _
        $region28: #{tpu_custom_call.1} parent=11 // pred_fallthru
          _
        // Predicated region
        $region29: #{tpu_custom_call.1} parent=11 // pred_check
          %p267 = pneg %p180
        $region30: #{tpu_custom_call.1} parent=11 // pred_check_branch
          %269 = sbr.rel (%p267) target = $region32
        $region31: #{tpu_custom_call.1} parent=11 // pred_region
          _
        $region32: #{tpu_custom_call.1} parent=11 // pred_fallthru
          _
        // Predicated region
        $region33: #{tpu_custom_call.1} parent=11 // pred_check
          %p270 = pneg %p201
        $region34: #{tpu_custom_call.1} parent=11 // pred_check_branch
          %272 = sbr.rel (%p270) target = $region36
        $region35: #{tpu_custom_call.1} parent=11 // pred_region
          _
        $region36: #{tpu_custom_call.1} parent=11 // pred_fallthru
          _
      $region12: #{tpu_custom_call.1} parent=5 // pred_fallthru
        _
      %p273 = scmp.lt.s32.totalorder %s23, 2
      // Predicated region
      $region37: #{tpu_custom_call.1} parent=5 // pred_check
        %p274 = pneg %p273
      $region38: #{tpu_custom_call.1} parent=5 // pred_check_branch
        %276 = sbr.rel (%p274) target = $region40
      $region39: #{tpu_custom_call.1} parent=5 // pred_region
        // Predicated region
        $region41: #{tpu_custom_call.1} parent=39 // pred_check
          %p277 = pneg %p43
        $region42: #{tpu_custom_call.1} parent=39 // pred_check_branch
          %279 = sbr.rel (%p277) target = $region44
        $region43: #{tpu_custom_call.1} parent=39 // pred_region
          %s280 = sand.u32 %s33, 1
          %s281 = scalar_lea.sflag [#allocation5], %s280
          %s282 = sand.u32 %s33, 1
          %s283 = smul.addr %s282, 16
          %s284 = scalar_lea.vmem [#allocation4], %s283
          %s285 = smul.u32 4, %s23
          %s287 = ssub.s32 256, 256
          %288 = vsyncadd %s281, %s287
          %s289 = smul.addr %s285, 64
          %s290 = scalar_lea.hbm %s0, %s289
          %s292 = sshll.u32 %s284, 4
          %s293 = int_to_ptr.vmem [resolvable:$true] %s292
          %295 = dma.hbm_to_vmem [thread:$0]  %s290, 256, %s293, %s281
        $region44: #{tpu_custom_call.1} parent=39 // pred_fallthru
          _
        // Predicated region
        $region45: #{tpu_custom_call.1} parent=39 // pred_check
          %p296 = pneg %p69
        $region46: #{tpu_custom_call.1} parent=39 // pred_check_branch
          %298 = sbr.rel (%p296) target = $region48
        $region47: #{tpu_custom_call.1} parent=39 // pred_region
          %s299 = sand.u32 %s23, 1
          %s300 = scalar_lea.sflag [#allocation7], %s299
          %s301 = sand.u32 %s59, 1
          %s302 = smul.addr %s301, 1024
          %s303 = scalar_lea.vmem [#allocation6], %s302
          %s304 = smul.u32 64, %s23
          %s306 = ssub.s32 16384, 16384
          %307 = vsyncadd %s300, %s306
          %s308 = smul.addr %s304, 4
          %s309 = smul.addr %s308, 64
          %s310 = scalar_lea.hbm %s1, %s309
          %s311 = sshll.u32 %s303, 4
          %s312 = int_to_ptr.vmem [resolvable:$true] %s311
          %317 = dma.hbm_to_vmem [thread:$0]  %s310, 16384, %s312, %s300, 256, 256, 16
        $region48: #{tpu_custom_call.1} parent=39 // pred_fallthru
          _
      $region40: #{tpu_custom_call.1} parent=5 // pred_fallthru
        _
      %p318 = scmp.le.s32.totalorder 1, %s23
      %p319 = scmp.lt.s32.totalorder %s23, 3
      %p320 = pnand %p318, %p319
      %p321 = pneg %p320
      // Predicated region
      $region49: #{tpu_custom_call.1} parent=5 // pred_check
        _
      $region50: #{tpu_custom_call.1} parent=5 // pred_check_branch
        %323 = sbr.rel (%p320) target = $region52
      $region51: #{tpu_custom_call.1} parent=5 // pred_region
        %s324 = ssub.s32 %s23, 1
        %s325 = sand.u32 %s36, 1
        %s326 = scalar_lea.sflag [#allocation5], %s325
        %s327 = sand.u32 %s36, 1
        %s328 = smul.addr %s327, 16
        %s329 = scalar_lea.vmem [#allocation4], %s328
        // Predicated region
        $region53: #{tpu_custom_call.1} parent=51 // pred_check
          %p330 = pneg %p49
        $region54: #{tpu_custom_call.1} parent=51 // pred_check_branch
          %332 = sbr.rel (%p330) target = $region56
        $region55: #{tpu_custom_call.1} parent=51 // pred_region
          %333 = dma.done %s326, 256
        $region56: #{tpu_custom_call.1} parent=51 // pred_fallthru
          _
        %s334 = sand.u32 %s28, 1
        %s335 = scalar_lea.sflag [#allocation7], %s334
        %s336 = sand.u32 %s62, 1
        %s337 = smul.addr %s336, 1024
        %s338 = scalar_lea.vmem [#allocation6], %s337
        // Predicated region
        $region57: #{tpu_custom_call.1} parent=51 // pred_check
          %p339 = pneg %p75
        $region58: #{tpu_custom_call.1} parent=51 // pred_check_branch
          %341 = sbr.rel (%p339) target = $region60
        $region59: #{tpu_custom_call.1} parent=51 // pred_region
          %342 = dma.done %s335, 16384
        $region60: #{tpu_custom_call.1} parent=51 // pred_fallthru
          _
        // Predicated region
        $region61: #{tpu_custom_call.1} parent=51 // pred_check
          %p343 = pneg %p96
        $region62: #{tpu_custom_call.1} parent=51 // pred_check_branch
          %345 = sbr.rel (%p343) target = $region64
        $region63: #{tpu_custom_call.1} parent=51 // pred_region
          %346 = dma.done [#allocation7], 512
        $region64: #{tpu_custom_call.1} parent=51 // pred_fallthru
          _
        // Predicated region
        $region65: #{tpu_custom_call.1} parent=51 // pred_check
          %p347 = pneg %p138
        $region66: #{tpu_custom_call.1} parent=51 // pred_check_branch
          %349 = sbr.rel (%p347) target = $region68
        $region67: #{tpu_custom_call.1} parent=51 // pred_region
          %350 = dma.done [#allocation10], 4096
        $region68: #{tpu_custom_call.1} parent=51 // pred_fallthru
          _
        %s351 = sand.u32 %s36, 1
        %s352 = scalar_lea.sflag [#allocation5], %s351
        %s353 = sand.u32 %s36, 1
        %s354 = smul.addr %s353, 16
        %s355 = scalar_lea.vmem [#allocation4], %s354
        %p356 = pneg %p49
        %p357 = pneg %p46
        %s358 = sand.u32 %s28, 1
        %s359 = scalar_lea.sflag [#allocation7], %s358
        %s360 = sand.u32 %s62, 1
        %s361 = smul.addr %s360, 1024
        %s362 = scalar_lea.vmem [#allocation6], %s361
        %p363 = pneg %p75
        %p364 = pneg %p72
        %p365 = pneg %p96
        %p366 = pneg %p93
        %p367 = pneg %p117
        %p368 = pneg %p114
        %p369 = pneg %p138
        %p370 = pneg %p135
        %p371 = pneg %p159
        %p372 = pneg %p156
        %p373 = pneg %p180
        %p374 = pneg %p177
        %p375 = pneg %p201
        %p376 = pneg %p198
        %p377 = pneg %p222
        %p378 = pneg %p219
        %s379 = smul.u32 4, %s28
        %s380 = smul.u32 64, %s28
        %p382 = scmp.eq.s32.totalorder %s28, 0
        // Predicated region
        $region69: #{tpu_custom_call.1} parent=51 // pred_check
          %p383 = pneg %p382
        $region70: #{tpu_custom_call.1} parent=51 // pred_check_branch
          %385 = sbr.rel (%p383) target = $region72
        $region71: #{tpu_custom_call.1} parent=51 // pred_region
          %386 = vst [vmem:[#allocation2] sm:$0xff] 0.0
          %387 = vst [vmem:[#allocation2 + $0x8] sm:$0xff] 0.0
          %388 = vst [vmem:[#allocation2 + $0x10] sm:$0xff] 0.0
          %389 = vst [vmem:[#allocation2 + $0x18] sm:$0xff] 0.0
        $region72: #{tpu_custom_call.1} parent=51 // pred_fallthru
          _
        %v390 = vld [vmem:[#allocation2] sm:$0xff]
        %v391 = vld [vmem:[#allocation2 + $0x8] sm:$0xff]
        %v392 = vld [vmem:[#allocation2 + $0x10] sm:$0xff]
        %v393 = vld [vmem:[#allocation2 + $0x18] sm:$0xff]
        %v394 = vld [vmem:[%s329] sm:$0xff]
        %v395 = vld [vmem:[%s329 + $0x8] sm:$0xff]
        %v396 = vld [vmem:[%s338] sm:$0xff]
        %v397 = vld [vmem:[%s338 + $0x8] sm:$0xff]
        %v398 = vld [vmem:[%s338 + $0x10] sm:$0xff]
        %v399 = vld [vmem:[%s338 + $0x18] sm:$0xff]
        %v400 = vld [vmem:[%s338 + $0x20] sm:$0xff]
        %v401 = vld [vmem:[%s338 + $0x28] sm:$0xff]
        %v402 = vld [vmem:[%s338 + $0x30] sm:$0xff]
        %v403 = vld [vmem:[%s338 + $0x38] sm:$0xff]
        %v404 = vld [vmem:[%s338 + $0x40] sm:$0xff]
        %v405 = vld [vmem:[%s338 + $0x48] sm:$0xff]
        %v406 = vld [vmem:[%s338 + $0x50] sm:$0xff]
        %v407 = vld [vmem:[%s338 + $0x58] sm:$0xff]
        %v408 = vld [vmem:[%s338 + $0x60] sm:$0xff]
        %v409 = vld [vmem:[%s338 + $0x68] sm:$0xff]
        %v410 = vld [vmem:[%s338 + $0x70] sm:$0xff]
        %v411 = vld [vmem:[%s338 + $0x78] sm:$0xff]
        %v412 = vld [vmem:[%s338 + $0x80] sm:$0xff]
        %v413 = vld [vmem:[%s338 + $0x88] sm:$0xff]
        %v414 = vld [vmem:[%s338 + $0x90] sm:$0xff]
        %v415 = vld [vmem:[%s338 + $0x98] sm:$0xff]
        %v416 = vld [vmem:[%s338 + $0xa0] sm:$0xff]
        %v417 = vld [vmem:[%s338 + $0xa8] sm:$0xff]
        %v418 = vld [vmem:[%s338 + $0xb0] sm:$0xff]
        %v419 = vld [vmem:[%s338 + $0xb8] sm:$0xff]
        %v420 = vld [vmem:[%s338 + $0xc0] sm:$0xff]
        %v421 = vld [vmem:[%s338 + $0xc8] sm:$0xff]
        %v422 = vld [vmem:[%s338 + $0xd0] sm:$0xff]
        %v423 = vld [vmem:[%s338 + $0xd8] sm:$0xff]
        %v424 = vld [vmem:[%s338 + $0xe0] sm:$0xff]
        %v425 = vld [vmem:[%s338 + $0xe8] sm:$0xff]
        %v426 = vld [vmem:[%s338 + $0xf0] sm:$0xff]
        %v427 = vld [vmem:[%s338 + $0xf8] sm:$0xff]
        %v428 = vld [vmem:[%s338 + $0x100] sm:$0xff]
        %v429 = vld [vmem:[%s338 + $0x108] sm:$0xff]
        %v430 = vld [vmem:[%s338 + $0x110] sm:$0xff]
        %v431 = vld [vmem:[%s338 + $0x118] sm:$0xff]
        %v432 = vld [vmem:[%s338 + $0x120] sm:$0xff]
        %v433 = vld [vmem:[%s338 + $0x128] sm:$0xff]
        %v434 = vld [vmem:[%s338 + $0x130] sm:$0xff]
        %v435 = vld [vmem:[%s338 + $0x138] sm:$0xff]
        %v436 = vld [vmem:[%s338 + $0x140] sm:$0xff]
        %v437 = vld [vmem:[%s338 + $0x148] sm:$0xff]
        %v438 = vld [vmem:[%s338 + $0x150] sm:$0xff]
        %v439 = vld [vmem:[%s338 + $0x158] sm:$0xff]
        %v440 = vld [vmem:[%s338 + $0x160] sm:$0xff]
        %v441 = vld [vmem:[%s338 + $0x168] sm:$0xff]
        %v442 = vld [vmem:[%s338 + $0x170] sm:$0xff]
        %v443 = vld [vmem:[%s338 + $0x178] sm:$0xff]
        %v444 = vld [vmem:[%s338 + $0x180] sm:$0xff]
        %v445 = vld [vmem:[%s338 + $0x188] sm:$0xff]
        %v446 = vld [vmem:[%s338 + $0x190] sm:$0xff]
        %v447 = vld [vmem:[%s338 + $0x198] sm:$0xff]
        %v448 = vld [vmem:[%s338 + $0x1a0] sm:$0xff]
        %v449 = vld [vmem:[%s338 + $0x1a8] sm:$0xff]
        %v450 = vld [vmem:[%s338 + $0x1b0] sm:$0xff]
        %v451 = vld [vmem:[%s338 + $0x1b8] sm:$0xff]
        %v452 = vld [vmem:[%s338 + $0x1c0] sm:$0xff]
        %v453 = vld [vmem:[%s338 + $0x1c8] sm:$0xff]
        %v454 = vld [vmem:[%s338 + $0x1d0] sm:$0xff]
        %v455 = vld [vmem:[%s338 + $0x1d8] sm:$0xff]
        %v456 = vld [vmem:[%s338 + $0x1e0] sm:$0xff]
        %v457 = vld [vmem:[%s338 + $0x1e8] sm:$0xff]
        %v458 = vld [vmem:[%s338 + $0x1f0] sm:$0xff]
        %v459 = vld [vmem:[%s338 + $0x1f8] sm:$0xff]
        %v460 = vld [vmem:[%s338 + $0x200] sm:$0xff]
        %v461 = vld [vmem:[%s338 + $0x208] sm:$0xff]
        %v462 = vld [vmem:[%s338 + $0x210] sm:$0xff]
        %v463 = vld [vmem:[%s338 + $0x218] sm:$0xff]
        %v464 = vld [vmem:[%s338 + $0x220] sm:$0xff]
        %v465 = vld [vmem:[%s338 + $0x228] sm:$0xff]
        %v466 = vld [vmem:[%s338 + $0x230] sm:$0xff]
        %v467 = vld [vmem:[%s338 + $0x238] sm:$0xff]
        %v468 = vld [vmem:[%s338 + $0x240] sm:$0xff]
        %v469 = vld [vmem:[%s338 + $0x248] sm:$0xff]
        %v470 = vld [vmem:[%s338 + $0x250] sm:$0xff]
        %v471 = vld [vmem:[%s338 + $0x258] sm:$0xff]
        %v472 = vld [vmem:[%s338 + $0x260] sm:$0xff]
        %v473 = vld [vmem:[%s338 + $0x268] sm:$0xff]
        %v474 = vld [vmem:[%s338 + $0x270] sm:$0xff]
        %v475 = vld [vmem:[%s338 + $0x278] sm:$0xff]
        %v476 = vld [vmem:[%s338 + $0x280] sm:$0xff]
        %v477 = vld [vmem:[%s338 + $0x288] sm:$0xff]
        %v478 = vld [vmem:[%s338 + $0x290] sm:$0xff]
        %v479 = vld [vmem:[%s338 + $0x298] sm:$0xff]
        %v480 = vld [vmem:[%s338 + $0x2a0] sm:$0xff]
        %v481 = vld [vmem:[%s338 + $0x2a8] sm:$0xff]
        %v482 = vld [vmem:[%s338 + $0x2b0] sm:$0xff]
        %v483 = vld [vmem:[%s338 + $0x2b8] sm:$0xff]
        %v484 = vld [vmem:[%s338 + $0x2c0] sm:$0xff]
        %v485 = vld [vmem:[%s338 + $0x2c8] sm:$0xff]
        %v486 = vld [vmem:[%s338 + $0x2d0] sm:$0xff]
        %v487 = vld [vmem:[%s338 + $0x2d8] sm:$0xff]
        %v488 = vld [vmem:[%s338 + $0x2e0] sm:$0xff]
        %v489 = vld [vmem:[%s338 + $0x2e8] sm:$0xff]
        %v490 = vld [vmem:[%s338 + $0x2f0] sm:$0xff]
        %v491 = vld [vmem:[%s338 + $0x2f8] sm:$0xff]
        %v492 = vld [vmem:[%s338 + $0x300] sm:$0xff]
        %v493 = vld [vmem:[%s338 + $0x308] sm:$0xff]
        %v494 = vld [vmem:[%s338 + $0x310] sm:$0xff]
        %v495 = vld [vmem:[%s338 + $0x318] sm:$0xff]
        %v496 = vld [vmem:[%s338 + $0x320] sm:$0xff]
        %v497 = vld [vmem:[%s338 + $0x328] sm:$0xff]
        %v498 = vld [vmem:[%s338 + $0x330] sm:$0xff]
        %v499 = vld [vmem:[%s338 + $0x338] sm:$0xff]
        %v500 = vld [vmem:[%s338 + $0x340] sm:$0xff]
        %v501 = vld [vmem:[%s338 + $0x348] sm:$0xff]
        %v502 = vld [vmem:[%s338 + $0x350] sm:$0xff]
        %v503 = vld [vmem:[%s338 + $0x358] sm:$0xff]
        %v504 = vld [vmem:[%s338 + $0x360] sm:$0xff]
        %v505 = vld [vmem:[%s338 + $0x368] sm:$0xff]
        %v506 = vld [vmem:[%s338 + $0x370] sm:$0xff]
        %v507 = vld [vmem:[%s338 + $0x378] sm:$0xff]
        %v508 = vld [vmem:[%s338 + $0x380] sm:$0xff]
        %v509 = vld [vmem:[%s338 + $0x388] sm:$0xff]
        %v510 = vld [vmem:[%s338 + $0x390] sm:$0xff]
        %v511 = vld [vmem:[%s338 + $0x398] sm:$0xff]
        %v512 = vld [vmem:[%s338 + $0x3a0] sm:$0xff]
        %v513 = vld [vmem:[%s338 + $0x3a8] sm:$0xff]
        %v514 = vld [vmem:[%s338 + $0x3b0] sm:$0xff]
        %v515 = vld [vmem:[%s338 + $0x3b8] sm:$0xff]
        %v516 = vld [vmem:[%s338 + $0x3c0] sm:$0xff]
        %v517 = vld [vmem:[%s338 + $0x3c8] sm:$0xff]
        %v518 = vld [vmem:[%s338 + $0x3d0] sm:$0xff]
        %v519 = vld [vmem:[%s338 + $0x3d8] sm:$0xff]
        %v520 = vld [vmem:[%s338 + $0x3e0] sm:$0xff]
        %v521 = vld [vmem:[%s338 + $0x3e8] sm:$0xff]
        %v522 = vld [vmem:[%s338 + $0x3f0] sm:$0xff]
        %v523 = vld [vmem:[%s338 + $0x3f8] sm:$0xff]
        %v526 = vunpack.c.l.b16 %v394
        %v527 = vunpack.c.h.b16 %v394
        %v528 = vunpack.c.l.b16 %v395
        %v529 = vunpack.c.h.b16 %v395
        %v530 = vpack.c.b16 %v526, %v526
        %v531 = vpack.c.b16 %v527, %v527
        %v532 = vpack.c.b16 %v528, %v528
        %v533 = vpack.c.b16 %v529, %v529
        %v666 = vunpack.c.l.b16 %v396
        %v667 = vunpack.c.h.b16 %v396
        %v668 = vunpack.c.l.b16 %v397
        %v669 = vunpack.c.h.b16 %v397
        %v670 = vunpack.c.l.b16 %v398
        %v671 = vunpack.c.h.b16 %v398
        %v672 = vunpack.c.l.b16 %v399
        %v673 = vunpack.c.h.b16 %v399
        %v674 = vunpack.c.l.b16 %v400
        %v675 = vunpack.c.h.b16 %v400
        %v676 = vunpack.c.l.b16 %v401
        %v677 = vunpack.c.h.b16 %v401
        %v678 = vunpack.c.l.b16 %v402
        %v679 = vunpack.c.h.b16 %v402
        %v680 = vunpack.c.l.b16 %v403
        %v681 = vunpack.c.h.b16 %v403
        %v682 = vunpack.c.l.b16 %v404
        %v683 = vunpack.c.h.b16 %v404
        %v684 = vunpack.c.l.b16 %v405
        %v685 = vunpack.c.h.b16 %v405
        %v686 = vunpack.c.l.b16 %v406
        %v687 = vunpack.c.h.b16 %v406
        %v688 = vunpack.c.l.b16 %v407
        %v689 = vunpack.c.h.b16 %v407
        %v690 = vunpack.c.l.b16 %v408
        %v691 = vunpack.c.h.b16 %v408
        %v692 = vunpack.c.l.b16 %v409
        %v693 = vunpack.c.h.b16 %v409
        %v694 = vunpack.c.l.b16 %v410
        %v695 = vunpack.c.h.b16 %v410
        %v696 = vunpack.c.l.b16 %v411
        %v697 = vunpack.c.h.b16 %v411
        %v698 = vunpack.c.l.b16 %v412
        %v699 = vunpack.c.h.b16 %v412
        %v700 = vunpack.c.l.b16 %v413
        %v701 = vunpack.c.h.b16 %v413
        %v702 = vunpack.c.l.b16 %v414
        %v703 = vunpack.c.h.b16 %v414
        %v704 = vunpack.c.l.b16 %v415
        %v705 = vunpack.c.h.b16 %v415
        %v706 = vunpack.c.l.b16 %v416
        %v707 = vunpack.c.h.b16 %v416
        %v708 = vunpack.c.l.b16 %v417
        %v709 = vunpack.c.h.b16 %v417
        %v710 = vunpack.c.l.b16 %v418
        %v711 = vunpack.c.h.b16 %v418
        %v712 = vunpack.c.l.b16 %v419
        %v713 = vunpack.c.h.b16 %v419
        %v714 = vunpack.c.l.b16 %v420
        %v715 = vunpack.c.h.b16 %v420
        %v716 = vunpack.c.l.b16 %v421
        %v717 = vunpack.c.h.b16 %v421
        %v718 = vunpack.c.l.b16 %v422
        %v719 = vunpack.c.h.b16 %v422
        %v720 = vunpack.c.l.b16 %v423
        %v721 = vunpack.c.h.b16 %v423
        %v722 = vunpack.c.l.b16 %v424
        %v723 = vunpack.c.h.b16 %v424
        %v724 = vunpack.c.l.b16 %v425
        %v725 = vunpack.c.h.b16 %v425
        %v726 = vunpack.c.l.b16 %v426
        %v727 = vunpack.c.h.b16 %v426
        %v728 = vunpack.c.l.b16 %v427
        %v729 = vunpack.c.h.b16 %v427
        %v730 = vunpack.c.l.b16 %v428
        %v731 = vunpack.c.h.b16 %v428
        %v732 = vunpack.c.l.b16 %v429
        %v733 = vunpack.c.h.b16 %v429
        %v734 = vunpack.c.l.b16 %v430
        %v735 = vunpack.c.h.b16 %v430
        %v736 = vunpack.c.l.b16 %v431
        %v737 = vunpack.c.h.b16 %v431
        %v738 = vunpack.c.l.b16 %v432
        %v739 = vunpack.c.h.b16 %v432
        %v740 = vunpack.c.l.b16 %v433
        %v741 = vunpack.c.h.b16 %v433
        %v742 = vunpack.c.l.b16 %v434
        %v743 = vunpack.c.h.b16 %v434
        %v744 = vunpack.c.l.b16 %v435
        %v745 = vunpack.c.h.b16 %v435
        %v746 = vunpack.c.l.b16 %v436
        %v747 = vunpack.c.h.b16 %v436
        %v748 = vunpack.c.l.b16 %v437
        %v749 = vunpack.c.h.b16 %v437
        %v750 = vunpack.c.l.b16 %v438
        %v751 = vunpack.c.h.b16 %v438
        %v752 = vunpack.c.l.b16 %v439
        %v753 = vunpack.c.h.b16 %v439
        %v754 = vunpack.c.l.b16 %v440
        %v755 = vunpack.c.h.b16 %v440
        %v756 = vunpack.c.l.b16 %v441
        %v757 = vunpack.c.h.b16 %v441
        %v758 = vunpack.c.l.b16 %v442
        %v759 = vunpack.c.h.b16 %v442
        %v760 = vunpack.c.l.b16 %v443
        %v761 = vunpack.c.h.b16 %v443
        %v762 = vunpack.c.l.b16 %v444
        %v763 = vunpack.c.h.b16 %v444
        %v764 = vunpack.c.l.b16 %v445
        %v765 = vunpack.c.h.b16 %v445
        %v766 = vunpack.c.l.b16 %v446
        %v767 = vunpack.c.h.b16 %v446
        %v768 = vunpack.c.l.b16 %v447
        %v769 = vunpack.c.h.b16 %v447
        %v770 = vunpack.c.l.b16 %v448
        %v771 = vunpack.c.h.b16 %v448
        %v772 = vunpack.c.l.b16 %v449
        %v773 = vunpack.c.h.b16 %v449
        %v774 = vunpack.c.l.b16 %v450
        %v775 = vunpack.c.h.b16 %v450
        %v776 = vunpack.c.l.b16 %v451
        %v777 = vunpack.c.h.b16 %v451
        %v778 = vunpack.c.l.b16 %v452
        %v779 = vunpack.c.h.b16 %v452
        %v780 = vunpack.c.l.b16 %v453
        %v781 = vunpack.c.h.b16 %v453
        %v782 = vunpack.c.l.b16 %v454
        %v783 = vunpack.c.h.b16 %v454
        %v784 = vunpack.c.l.b16 %v455
        %v785 = vunpack.c.h.b16 %v455
        %v786 = vunpack.c.l.b16 %v456
        %v787 = vunpack.c.h.b16 %v456
        %v788 = vunpack.c.l.b16 %v457
        %v789 = vunpack.c.h.b16 %v457
        %v790 = vunpack.c.l.b16 %v458
        %v791 = vunpack.c.h.b16 %v458
        %v792 = vunpack.c.l.b16 %v459
        %v793 = vunpack.c.h.b16 %v459
        %v794 = vunpack.c.l.b16 %v460
        %v795 = vunpack.c.h.b16 %v460
        %v796 = vunpack.c.l.b16 %v461
        %v797 = vunpack.c.h.b16 %v461
        %v798 = vunpack.c.l.b16 %v462
        %v799 = vunpack.c.h.b16 %v462
        %v800 = vunpack.c.l.b16 %v463
        %v801 = vunpack.c.h.b16 %v463
        %v802 = vunpack.c.l.b16 %v464
        %v803 = vunpack.c.h.b16 %v464
        %v804 = vunpack.c.l.b16 %v465
        %v805 = vunpack.c.h.b16 %v465
        %v806 = vunpack.c.l.b16 %v466
        %v807 = vunpack.c.h.b16 %v466
        %v808 = vunpack.c.l.b16 %v467
        %v809 = vunpack.c.h.b16 %v467
        %v810 = vunpack.c.l.b16 %v468
        %v811 = vunpack.c.h.b16 %v468
        %v812 = vunpack.c.l.b16 %v469
        %v813 = vunpack.c.h.b16 %v469
        %v814 = vunpack.c.l.b16 %v470
        %v815 = vunpack.c.h.b16 %v470
        %v816 = vunpack.c.l.b16 %v471
        %v817 = vunpack.c.h.b16 %v471
        %v818 = vunpack.c.l.b16 %v472
        %v819 = vunpack.c.h.b16 %v472
        %v820 = vunpack.c.l.b16 %v473
        %v821 = vunpack.c.h.b16 %v473
        %v822 = vunpack.c.l.b16 %v474
        %v823 = vunpack.c.h.b16 %v474
        %v824 = vunpack.c.l.b16 %v475
        %v825 = vunpack.c.h.b16 %v475
        %v826 = vunpack.c.l.b16 %v476
        %v827 = vunpack.c.h.b16 %v476
        %v828 = vunpack.c.l.b16 %v477
        %v829 = vunpack.c.h.b16 %v477
        %v830 = vunpack.c.l.b16 %v478
        %v831 = vunpack.c.h.b16 %v478
        %v832 = vunpack.c.l.b16 %v479
        %v833 = vunpack.c.h.b16 %v479
        %v834 = vunpack.c.l.b16 %v480
        %v835 = vunpack.c.h.b16 %v480
        %v836 = vunpack.c.l.b16 %v481
        %v837 = vunpack.c.h.b16 %v481
        %v838 = vunpack.c.l.b16 %v482
        %v839 = vunpack.c.h.b16 %v482
        %v840 = vunpack.c.l.b16 %v483
        %v841 = vunpack.c.h.b16 %v483
        %v842 = vunpack.c.l.b16 %v484
        %v843 = vunpack.c.h.b16 %v484
        %v844 = vunpack.c.l.b16 %v485
        %v845 = vunpack.c.h.b16 %v485
        %v846 = vunpack.c.l.b16 %v486
        %v847 = vunpack.c.h.b16 %v486
        %v848 = vunpack.c.l.b16 %v487
        %v849 = vunpack.c.h.b16 %v487
        %v850 = vunpack.c.l.b16 %v488
        %v851 = vunpack.c.h.b16 %v488
        %v852 = vunpack.c.l.b16 %v489
        %v853 = vunpack.c.h.b16 %v489
        %v854 = vunpack.c.l.b16 %v490
        %v855 = vunpack.c.h.b16 %v490
        %v856 = vunpack.c.l.b16 %v491
        %v857 = vunpack.c.h.b16 %v491
        %v858 = vunpack.c.l.b16 %v492
        %v859 = vunpack.c.h.b16 %v492
        %v860 = vunpack.c.l.b16 %v493
        %v861 = vunpack.c.h.b16 %v493
        %v862 = vunpack.c.l.b16 %v494
        %v863 = vunpack.c.h.b16 %v494
        %v864 = vunpack.c.l.b16 %v495
        %v865 = vunpack.c.h.b16 %v495
        %v866 = vunpack.c.l.b16 %v496
        %v867 = vunpack.c.h.b16 %v496
        %v868 = vunpack.c.l.b16 %v497
        %v869 = vunpack.c.h.b16 %v497
        %v870 = vunpack.c.l.b16 %v498
        %v871 = vunpack.c.h.b16 %v498
        %v872 = vunpack.c.l.b16 %v499
        %v873 = vunpack.c.h.b16 %v499
        %v874 = vunpack.c.l.b16 %v500
        %v875 = vunpack.c.h.b16 %v500
        %v876 = vunpack.c.l.b16 %v501
        %v877 = vunpack.c.h.b16 %v501
        %v878 = vunpack.c.l.b16 %v502
        %v879 = vunpack.c.h.b16 %v502
        %v880 = vunpack.c.l.b16 %v503
        %v881 = vunpack.c.h.b16 %v503
        %v882 = vunpack.c.l.b16 %v504
        %v883 = vunpack.c.h.b16 %v504
        %v884 = vunpack.c.l.b16 %v505
        %v885 = vunpack.c.h.b16 %v505
        %v886 = vunpack.c.l.b16 %v506
        %v887 = vunpack.c.h.b16 %v506
        %v888 = vunpack.c.l.b16 %v507
        %v889 = vunpack.c.h.b16 %v507
        %v890 = vunpack.c.l.b16 %v508
        %v891 = vunpack.c.h.b16 %v508
        %v892 = vunpack.c.l.b16 %v509
        %v893 = vunpack.c.h.b16 %v509
        %v894 = vunpack.c.l.b16 %v510
        %v895 = vunpack.c.h.b16 %v510
        %v896 = vunpack.c.l.b16 %v511
        %v897 = vunpack.c.h.b16 %v511
        %v898 = vunpack.c.l.b16 %v512
        %v899 = vunpack.c.h.b16 %v512
        %v900 = vunpack.c.l.b16 %v513
        %v901 = vunpack.c.h.b16 %v513
        %v902 = vunpack.c.l.b16 %v514
        %v903 = vunpack.c.h.b16 %v514
        %v904 = vunpack.c.l.b16 %v515
        %v905 = vunpack.c.h.b16 %v515
        %v906 = vunpack.c.l.b16 %v516
        %v907 = vunpack.c.h.b16 %v516
        %v908 = vunpack.c.l.b16 %v517
        %v909 = vunpack.c.h.b16 %v517
        %v910 = vunpack.c.l.b16 %v518
        %v911 = vunpack.c.h.b16 %v518
        %v912 = vunpack.c.l.b16 %v519
        %v913 = vunpack.c.h.b16 %v519
        %v914 = vunpack.c.l.b16 %v520
        %v915 = vunpack.c.h.b16 %v520
        %v916 = vunpack.c.l.b16 %v521
        %v917 = vunpack.c.h.b16 %v521
        %v918 = vunpack.c.l.b16 %v522
        %v919 = vunpack.c.h.b16 %v522
        %v920 = vunpack.c.l.b16 %v523
        %v921 = vunpack.c.h.b16 %v523
        %v922 = vpack.c.b16 %v670, %v666
        %v923 = vpack.c.b16 %v671, %v667
        %v924 = vpack.c.b16 %v672, %v668
        %v925 = vpack.c.b16 %v673, %v669
        %v926 = vpack.c.b16 %v678, %v674
        %v927 = vpack.c.b16 %v679, %v675
        %v928 = vpack.c.b16 %v680, %v676
        %v929 = vpack.c.b16 %v681, %v677
        %v930 = vpack.c.b16 %v686, %v682
        %v931 = vpack.c.b16 %v687, %v683
        %v932 = vpack.c.b16 %v688, %v684
        %v933 = vpack.c.b16 %v689, %v685
        %v934 = vpack.c.b16 %v694, %v690
        %v935 = vpack.c.b16 %v695, %v691
        %v936 = vpack.c.b16 %v696, %v692
        %v937 = vpack.c.b16 %v697, %v693
        %v938 = vpack.c.b16 %v702, %v698
        %v939 = vpack.c.b16 %v703, %v699
        %v940 = vpack.c.b16 %v704, %v700
        %v941 = vpack.c.b16 %v705, %v701
        %v942 = vpack.c.b16 %v710, %v706
        %v943 = vpack.c.b16 %v711, %v707
        %v944 = vpack.c.b16 %v712, %v708
        %v945 = vpack.c.b16 %v713, %v709
        %v946 = vpack.c.b16 %v718, %v714
        %v947 = vpack.c.b16 %v719, %v715
        %v948 = vpack.c.b16 %v720, %v716
        %v949 = vpack.c.b16 %v721, %v717
        %v950 = vpack.c.b16 %v726, %v722
        %v951 = vpack.c.b16 %v727, %v723
        %v952 = vpack.c.b16 %v728, %v724
        %v953 = vpack.c.b16 %v729, %v725
        %v954 = vpack.c.b16 %v734, %v730
        %v955 = vpack.c.b16 %v735, %v731
        %v956 = vpack.c.b16 %v736, %v732
        %v957 = vpack.c.b16 %v737, %v733
        %v958 = vpack.c.b16 %v742, %v738
        %v959 = vpack.c.b16 %v743, %v739
        %v960 = vpack.c.b16 %v744, %v740
        %v961 = vpack.c.b16 %v745, %v741
        %v962 = vpack.c.b16 %v750, %v746
        %v963 = vpack.c.b16 %v751, %v747
        %v964 = vpack.c.b16 %v752, %v748
        %v965 = vpack.c.b16 %v753, %v749
        %v966 = vpack.c.b16 %v758, %v754
        %v967 = vpack.c.b16 %v759, %v755
        %v968 = vpack.c.b16 %v760, %v756
        %v969 = vpack.c.b16 %v761, %v757
        %v970 = vpack.c.b16 %v766, %v762
        %v971 = vpack.c.b16 %v767, %v763
        %v972 = vpack.c.b16 %v768, %v764
        %v973 = vpack.c.b16 %v769, %v765
        %v974 = vpack.c.b16 %v774, %v770
        %v975 = vpack.c.b16 %v775, %v771
        %v976 = vpack.c.b16 %v776, %v772
        %v977 = vpack.c.b16 %v777, %v773
        %v978 = vpack.c.b16 %v782, %v778
        %v979 = vpack.c.b16 %v783, %v779
        %v980 = vpack.c.b16 %v784, %v780
        %v981 = vpack.c.b16 %v785, %v781
        %v982 = vpack.c.b16 %v790, %v786
        %v983 = vpack.c.b16 %v791, %v787
        %v984 = vpack.c.b16 %v792, %v788
        %v985 = vpack.c.b16 %v793, %v789
        %v986 = vpack.c.b16 %v798, %v794
        %v987 = vpack.c.b16 %v799, %v795
        %v988 = vpack.c.b16 %v800, %v796
        %v989 = vpack.c.b16 %v801, %v797
        %v990 = vpack.c.b16 %v806, %v802
        %v991 = vpack.c.b16 %v807, %v803
        %v992 = vpack.c.b16 %v808, %v804
        %v993 = vpack.c.b16 %v809, %v805
        %v994 = vpack.c.b16 %v814, %v810
        %v995 = vpack.c.b16 %v815, %v811
        %v996 = vpack.c.b16 %v816, %v812
        %v997 = vpack.c.b16 %v817, %v813
        %v998 = vpack.c.b16 %v822, %v818
        %v999 = vpack.c.b16 %v823, %v819
        %v1000 = vpack.c.b16 %v824, %v820
        %v1001 = vpack.c.b16 %v825, %v821
        %v1002 = vpack.c.b16 %v830, %v826
        %v1003 = vpack.c.b16 %v831, %v827
        %v1004 = vpack.c.b16 %v832, %v828
        %v1005 = vpack.c.b16 %v833, %v829
        %v1006 = vpack.c.b16 %v838, %v834
        %v1007 = vpack.c.b16 %v839, %v835
        %v1008 = vpack.c.b16 %v840, %v836
        %v1009 = vpack.c.b16 %v841, %v837
        %v1010 = vpack.c.b16 %v846, %v842
        %v1011 = vpack.c.b16 %v847, %v843
        %v1012 = vpack.c.b16 %v848, %v844
        %v1013 = vpack.c.b16 %v849, %v845
        %v1014 = vpack.c.b16 %v854, %v850
        %v1015 = vpack.c.b16 %v855, %v851
        %v1016 = vpack.c.b16 %v856, %v852
        %v1017 = vpack.c.b16 %v857, %v853
        %v1018 = vpack.c.b16 %v862, %v858
        %v1019 = vpack.c.b16 %v863, %v859
        %v1020 = vpack.c.b16 %v864, %v860
        %v1021 = vpack.c.b16 %v865, %v861
        %v1022 = vpack.c.b16 %v870, %v866
        %v1023 = vpack.c.b16 %v871, %v867
        %v1024 = vpack.c.b16 %v872, %v868
        %v1025 = vpack.c.b16 %v873, %v869
        %v1026 = vpack.c.b16 %v878, %v874
        %v1027 = vpack.c.b16 %v879, %v875
        %v1028 = vpack.c.b16 %v880, %v876
        %v1029 = vpack.c.b16 %v881, %v877
        %v1030 = vpack.c.b16 %v886, %v882
        %v1031 = vpack.c.b16 %v887, %v883
        %v1032 = vpack.c.b16 %v888, %v884
        %v1033 = vpack.c.b16 %v889, %v885
        %v1034 = vpack.c.b16 %v894, %v890
        %v1035 = vpack.c.b16 %v895, %v891
        %v1036 = vpack.c.b16 %v896, %v892
        %v1037 = vpack.c.b16 %v897, %v893
        %v1038 = vpack.c.b16 %v902, %v898
        %v1039 = vpack.c.b16 %v903, %v899
        %v1040 = vpack.c.b16 %v904, %v900
        %v1041 = vpack.c.b16 %v905, %v901
        %v1042 = vpack.c.b16 %v910, %v906
        %v1043 = vpack.c.b16 %v911, %v907
        %v1044 = vpack.c.b16 %v912, %v908
        %v1045 = vpack.c.b16 %v913, %v909
        %v1046 = vpack.c.b16 %v918, %v914
        %v1047 = vpack.c.b16 %v919, %v915
        %v1048 = vpack.c.b16 %v920, %v916
        %v1049 = vpack.c.b16 %v921, %v917
        %1178 = vmatprep.subr.bf16.mxu0 %v951
        %1179 = vmatpush1.bf16.msra.mxu0 %v950
        %1180 = vmatprep.subr.bf16.mxu0 %v947
        %1181 = vmatpush1.bf16.msra.mxu0 %v946
        %1182 = vmatprep.subr.bf16.mxu0 %v943
        %1183 = vmatpush1.bf16.msra.mxu0 %v942
        %1184 = vmatprep.subr.bf16.mxu0 %v939
        %1185 = vmatpush1.bf16.msra.mxu0 %v938
        %1186 = vmatprep.subr.bf16.mxu0 %v935
        %1187 = vmatpush1.bf16.msra.mxu0 %v934
        %1188 = vmatprep.subr.bf16.mxu0 %v931
        %1189 = vmatpush1.bf16.msra.mxu0 %v930
        %1190 = vmatprep.subr.bf16.mxu0 %v927
        %1191 = vmatpush1.bf16.msra.mxu0 %v926
        %1192 = vmatprep.subr.bf16.mxu0 %v923
        %1193 = vmatpush1.bf16.msra.mxu0 %v922
        %1194 = vmatprep.subr.bf16.mxu0 %v983
        %1195 = vmatpush2.bf16.msra.mxu0 %v982
        %1196 = vmatprep.subr.bf16.mxu0 %v979
        %1197 = vmatpush2.bf16.msra.mxu0 %v978
        %1198 = vmatprep.subr.bf16.mxu0 %v975
        %1199 = vmatpush2.bf16.msra.mxu0 %v974
        %1200 = vmatprep.subr.bf16.mxu0 %v971
        %1201 = vmatpush2.bf16.msra.mxu0 %v970
        %1202 = vmatprep.subr.bf16.mxu0 %v967
        %1203 = vmatpush2.bf16.msra.mxu0 %v966
        %1204 = vmatprep.subr.bf16.mxu0 %v963
        %1205 = vmatpush2.bf16.msra.mxu0 %v962
        %1206 = vmatprep.subr.bf16.mxu0 %v959
        %1207 = vmatpush2.bf16.msra.mxu0 %v958
        %1208 = vmatprep.subr.bf16.mxu0 %v955
        %1209 = vmatpush2.bf16.msra.mxu0 %v954
        %1210 = vmatprep.mubr.bf16.mxu0 %v531
        %1211 = vmatmul.mubr.bf16.gmra.mxu0 %v530
        %v1212 = vpop.f32.mrf.mxu0
        %v1213 = vadd.f32 0.0, %v1212
        %v1214 = vpop.f32.mrf.mxu0
        %v1215 = vadd.f32 0.0, %v1214
        %v1216 = vpop.f32.mrf.mxu0
        %v1217 = vpop.f32.mrf.mxu0
        %1218 = vdwg.mxu0
        %1219 = vmatprep.subr.bf16.mxu0 %v1015
        %1220 = vmatpush1.bf16.msra.mxu0 %v1014
        %1221 = vmatprep.subr.bf16.mxu0 %v1011
        %1222 = vmatpush1.bf16.msra.mxu0 %v1010
        %1223 = vmatprep.subr.bf16.mxu0 %v1007
        %1224 = vmatpush1.bf16.msra.mxu0 %v1006
        %1225 = vmatprep.subr.bf16.mxu0 %v1003
        %1226 = vmatpush1.bf16.msra.mxu0 %v1002
        %1227 = vmatprep.subr.bf16.mxu0 %v999
        %1228 = vmatpush1.bf16.msra.mxu0 %v998
        %1229 = vmatprep.subr.bf16.mxu0 %v995
        %1230 = vmatpush1.bf16.msra.mxu0 %v994
        %1231 = vmatprep.subr.bf16.mxu0 %v991
        %1232 = vmatpush1.bf16.msra.mxu0 %v990
        %1233 = vmatprep.subr.bf16.mxu0 %v987
        %1234 = vmatpush1.bf16.msra.mxu0 %v986
        %1235 = vmatprep.subr.bf16.mxu0 %v1047
        %1236 = vmatpush2.bf16.msra.mxu0 %v1046
        %1237 = vmatprep.subr.bf16.mxu0 %v1043
        %1238 = vmatpush2.bf16.msra.mxu0 %v1042
        %1239 = vmatprep.subr.bf16.mxu0 %v1039
        %1240 = vmatpush2.bf16.msra.mxu0 %v1038
        %1241 = vmatprep.subr.bf16.mxu0 %v1035
        %1242 = vmatpush2.bf16.msra.mxu0 %v1034
        %1243 = vmatprep.subr.bf16.mxu0 %v1031
        %1244 = vmatpush2.bf16.msra.mxu0 %v1030
        %1245 = vmatprep.subr.bf16.mxu0 %v1027
        %1246 = vmatpush2.bf16.msra.mxu0 %v1026
        %1247 = vmatprep.subr.bf16.mxu0 %v1023
        %1248 = vmatpush2.bf16.msra.mxu0 %v1022
        %1249 = vmatprep.subr.bf16.mxu0 %v1019
        %1250 = vmatpush2.bf16.msra.mxu0 %v1018
        %1251 = vmatprep.mubr.bf16.mxu0 %v533
        %1252 = vmatmul.mubr.bf16.gmra.mxu0 %v532
        %v1253 = vpop.f32.mrf.mxu0
        %v1254 = vadd.f32 %v1213, %v1253
        %v1255 = vpop.f32.mrf.mxu0
        %v1256 = vadd.f32 %v1215, %v1255
        %v1257 = vpop.f32.mrf.mxu0
        %v1258 = vpop.f32.mrf.mxu0
        %1259 = vdwg.mxu0
        %1260 = vmatprep.subr.bf16.mxu0 %v953
        %1261 = vmatpush1.bf16.msra.mxu0 %v952
        %1262 = vmatprep.subr.bf16.mxu0 %v949
        %1263 = vmatpush1.bf16.msra.mxu0 %v948
        %1264 = vmatprep.subr.bf16.mxu0 %v945
        %1265 = vmatpush1.bf16.msra.mxu0 %v944
        %1266 = vmatprep.subr.bf16.mxu0 %v941
        %1267 = vmatpush1.bf16.msra.mxu0 %v940
        %1268 = vmatprep.subr.bf16.mxu0 %v937
        %1269 = vmatpush1.bf16.msra.mxu0 %v936
        %1270 = vmatprep.subr.bf16.mxu0 %v933
        %1271 = vmatpush1.bf16.msra.mxu0 %v932
        %1272 = vmatprep.subr.bf16.mxu0 %v929
        %1273 = vmatpush1.bf16.msra.mxu0 %v928
        %1274 = vmatprep.subr.bf16.mxu0 %v925
        %1275 = vmatpush1.bf16.msra.mxu0 %v924
        %1276 = vmatprep.subr.bf16.mxu0 %v985
        %1277 = vmatpush2.bf16.msra.mxu0 %v984
        %1278 = vmatprep.subr.bf16.mxu0 %v981
        %1279 = vmatpush2.bf16.msra.mxu0 %v980
        %1280 = vmatprep.subr.bf16.mxu0 %v977
        %1281 = vmatpush2.bf16.msra.mxu0 %v976
        %1282 = vmatprep.subr.bf16.mxu0 %v973
        %1283 = vmatpush2.bf16.msra.mxu0 %v972
        %1284 = vmatprep.subr.bf16.mxu0 %v969
        %1285 = vmatpush2.bf16.msra.mxu0 %v968
        %1286 = vmatprep.subr.bf16.mxu0 %v965
        %1287 = vmatpush2.bf16.msra.mxu0 %v964
        %1288 = vmatprep.subr.bf16.mxu0 %v961
        %1289 = vmatpush2.bf16.msra.mxu0 %v960
        %1290 = vmatprep.subr.bf16.mxu0 %v957
        %1291 = vmatpush2.bf16.msra.mxu0 %v956
        %1292 = vmatprep.mubr.bf16.mxu0 %v531
        %1293 = vmatmul.mubr.bf16.gmra.mxu0 %v530
        %v1294 = vpop.f32.mrf.mxu0
        %v1295 = vadd.f32 0.0, %v1294
        %v1296 = vpop.f32.mrf.mxu0
        %v1297 = vadd.f32 0.0, %v1296
        %v1298 = vpop.f32.mrf.mxu0
        %v1299 = vpop.f32.mrf.mxu0
        %1300 = vdwg.mxu0
        %1301 = vmatprep.subr.bf16.mxu0 %v1017
        %1302 = vmatpush1.bf16.msra.mxu0 %v1016
        %1303 = vmatprep.subr.bf16.mxu0 %v1013
        %1304 = vmatpush1.bf16.msra.mxu0 %v1012
        %1305 = vmatprep.subr.bf16.mxu0 %v1009
        %1306 = vmatpush1.bf16.msra.mxu0 %v1008
        %1307 = vmatprep.subr.bf16.mxu0 %v1005
        %1308 = vmatpush1.bf16.msra.mxu0 %v1004
        %1309 = vmatprep.subr.bf16.mxu0 %v1001
        %1310 = vmatpush1.bf16.msra.mxu0 %v1000
        %1311 = vmatprep.subr.bf16.mxu0 %v997
        %1312 = vmatpush1.bf16.msra.mxu0 %v996
        %1313 = vmatprep.subr.bf16.mxu0 %v993
        %1314 = vmatpush1.bf16.msra.mxu0 %v992
        %1315 = vmatprep.subr.bf16.mxu0 %v989
        %1316 = vmatpush1.bf16.msra.mxu0 %v988
        %1317 = vmatprep.subr.bf16.mxu0 %v1049
        %1318 = vmatpush2.bf16.msra.mxu0 %v1048
        %1319 = vmatprep.subr.bf16.mxu0 %v1045
        %1320 = vmatpush2.bf16.msra.mxu0 %v1044
        %1321 = vmatprep.subr.bf16.mxu0 %v1041
        %1322 = vmatpush2.bf16.msra.mxu0 %v1040
        %1323 = vmatprep.subr.bf16.mxu0 %v1037
        %1324 = vmatpush2.bf16.msra.mxu0 %v1036
        %1325 = vmatprep.subr.bf16.mxu0 %v1033
        %1326 = vmatpush2.bf16.msra.mxu0 %v1032
        %1327 = vmatprep.subr.bf16.mxu0 %v1029
        %1328 = vmatpush2.bf16.msra.mxu0 %v1028
        %1329 = vmatprep.subr.bf16.mxu0 %v1025
        %1330 = vmatpush2.bf16.msra.mxu0 %v1024
        %1331 = vmatprep.subr.bf16.mxu0 %v1021
        %1332 = vmatpush2.bf16.msra.mxu0 %v1020
        %1333 = vmatprep.mubr.bf16.mxu0 %v533
        %1334 = vmatmul.mubr.bf16.gmra.mxu0 %v532
        %v1335 = vpop.f32.mrf.mxu0
        %v1336 = vadd.f32 %v1295, %v1335
        %v1337 = vpop.f32.mrf.mxu0
        %v1338 = vadd.f32 %v1297, %v1337
        %v1339 = vpop.f32.mrf.mxu0
        %v1340 = vpop.f32.mrf.mxu0
        %1341 = vdwg.mxu0
        %v1342 = vadd.f32 %v390, %v1254
        %v1343 = vadd.f32 %v391, %v1256
        %v1344 = vadd.f32 %v392, %v1336
        %v1345 = vadd.f32 %v393, %v1338
        %1346 = vst [vmem:[#allocation2] sm:$0xff] %v1342
        %1347 = vst [vmem:[#allocation2 + $0x8] sm:$0xff] %v1343
        %1348 = vst [vmem:[#allocation2 + $0x10] sm:$0xff] %v1344
        %1349 = vst [vmem:[#allocation2 + $0x18] sm:$0xff] %v1345
        %p1350 = scmp.eq.s32.totalorder %s28, 1
        // Predicated region
        $region73: #{tpu_custom_call.1} parent=51 // pred_check
          %p1351 = pneg %p1350
        $region74: #{tpu_custom_call.1} parent=51 // pred_check_branch
          %1353 = sbr.rel (%p1351) target = $region76
        $region75: #{tpu_custom_call.1} parent=51 // pred_region
          %v1354 = vld [vmem:[#allocation2] sm:$0xff]
          %v1355 = vld [vmem:[#allocation2 + $0x8] sm:$0xff]
          %v1356 = vld [vmem:[#allocation2 + $0x10] sm:$0xff]
          %v1357 = vld [vmem:[#allocation2 + $0x18] sm:$0xff]
          %v1358 = vld [vmem:[%s3] sm:$0xf]
          %v1360 = vlaneseq
          %v1361 = vshrl.u32 %v1360, 7
          %v1362 = vsub.s32 0, %v1361
          %v1363 = vrot.slane %v1358, %v1362
          %v1364 = vlaneseq
          %v1365 = vshrl.u32 %v1364, 7
          %v1366 = vsub.s32 1, %v1365
          %v1367 = vrot.slane %v1358, %v1366
          %v1368 = vlaneseq
          %v1369 = vshrl.u32 %v1368, 7
          %v1370 = vsub.s32 2, %v1369
          %v1371 = vrot.slane %v1358, %v1370
          %v1372 = vlaneseq
          %v1373 = vshrl.u32 %v1372, 7
          %v1374 = vsub.s32 3, %v1373
          %v1375 = vrot.slane %v1358, %v1374
          %v1380 = vadd.f32 %v1354, %v1363
          %v1381 = vadd.f32 %v1355, %v1367
          %v1382 = vadd.f32 %v1356, %v1371
          %v1383 = vadd.f32 %v1357, %v1375
          %v1384 = vmax.f32 %v1380, 0.0
          %v1385 = vmax.f32 %v1381, 0.0
          %v1386 = vmax.f32 %v1382, 0.0
          %v1387 = vmax.f32 %v1383, 0.0
          %v1388 = vld [vmem:[#allocation8] sm:$0xff]
          %v1389 = vld [vmem:[#allocation8 + $0x8] sm:$0xff]
          %v1390 = vld [vmem:[#allocation8 + $0x10] sm:$0xff]
          %v1391 = vld [vmem:[#allocation8 + $0x18] sm:$0xff]
          %v1392 = vsub.f32 %v1384, %v1388
          %v1393 = vsub.f32 %v1385, %v1389
          %v1394 = vsub.f32 %v1386, %v1390
          %v1395 = vsub.f32 %v1387, %v1391
          %v1396 = vand.u32 2147483647, %v1392
          %v1397 = vand.u32 2147483647, %v1393
          %v1398 = vand.u32 2147483647, %v1394
          %v1399 = vand.u32 2147483647, %v1395
          %v1400 = vpack.c.bf16 %v1396, %v1396
          %v1401 = vpack.c.bf16 %v1397, %v1397
          %v1402 = vpack.c.bf16 %v1398, %v1398
          %v1403 = vpack.c.bf16 %v1399, %v1399
          %v1404 = vld [vmem:[#allocation9] sm:$0xf]
          %v1405 = vld [vmem:[#allocation9 + $0x4] sm:$0xf]
          %v1406 = vld [vmem:[#allocation9 + $0x8] sm:$0xf]
          %v1407 = vld [vmem:[#allocation9 + $0xc] sm:$0xf]
          %v1408 = vld [vmem:[#allocation9 + $0x10] sm:$0xf]
          %v1409 = vld [vmem:[#allocation9 + $0x14] sm:$0xf]
          %v1410 = vld [vmem:[#allocation9 + $0x18] sm:$0xf]
          %v1411 = vld [vmem:[#allocation9 + $0x1c] sm:$0xf]
          %v1412 = vld [vmem:[#allocation9 + $0x20] sm:$0xf]
          %v1413 = vld [vmem:[#allocation9 + $0x24] sm:$0xf]
          %v1414 = vld [vmem:[#allocation9 + $0x28] sm:$0xf]
          %v1415 = vld [vmem:[#allocation9 + $0x2c] sm:$0xf]
          %v1416 = vld [vmem:[#allocation9 + $0x30] sm:$0xf]
          %v1417 = vld [vmem:[#allocation9 + $0x34] sm:$0xf]
          %v1418 = vld [vmem:[#allocation9 + $0x38] sm:$0xf]
          %v1419 = vld [vmem:[#allocation9 + $0x3c] sm:$0xf]
          %v1420 = vld [vmem:[#allocation9 + $0x40] sm:$0xf]
          %v1421 = vld [vmem:[#allocation9 + $0x44] sm:$0xf]
          %v1422 = vld [vmem:[#allocation9 + $0x48] sm:$0xf]
          %v1423 = vld [vmem:[#allocation9 + $0x4c] sm:$0xf]
          %v1424 = vld [vmem:[#allocation9 + $0x50] sm:$0xf]
          %v1425 = vld [vmem:[#allocation9 + $0x54] sm:$0xf]
          %v1426 = vld [vmem:[#allocation9 + $0x58] sm:$0xf]
          %v1427 = vld [vmem:[#allocation9 + $0x5c] sm:$0xf]
          %v1428 = vld [vmem:[#allocation9 + $0x60] sm:$0xf]
          %v1429 = vld [vmem:[#allocation9 + $0x64] sm:$0xf]
          %v1430 = vld [vmem:[#allocation9 + $0x68] sm:$0xf]
          %v1431 = vld [vmem:[#allocation9 + $0x6c] sm:$0xf]
          %v1432 = vld [vmem:[#allocation9 + $0x70] sm:$0xf]
          %v1433 = vld [vmem:[#allocation9 + $0x74] sm:$0xf]
          %v1434 = vld [vmem:[#allocation9 + $0x78] sm:$0xf]
          %v1435 = vld [vmem:[#allocation9 + $0x7c] sm:$0xf]
          %v1436 = vld [vmem:[#allocation9 + $0x80] sm:$0xf]
          %v1437 = vld [vmem:[#allocation9 + $0x84] sm:$0xf]
          %v1438 = vld [vmem:[#allocation9 + $0x88] sm:$0xf]
          %v1439 = vld [vmem:[#allocation9 + $0x8c] sm:$0xf]
          %v1440 = vld [vmem:[#allocation9 + $0x90] sm:$0xf]
          %v1441 = vld [vmem:[#allocation9 + $0x94] sm:$0xf]
          %v1442 = vld [vmem:[#allocation9 + $0x98] sm:$0xf]
          %v1443 = vld [vmem:[#allocation9 + $0x9c] sm:$0xf]
          %v1444 = vld [vmem:[#allocation9 + $0xa0] sm:$0xf]
          %v1445 = vld [vmem:[#allocation9 + $0xa4] sm:$0xf]
          %v1446 = vld [vmem:[#allocation9 + $0xa8] sm:$0xf]
          %v1447 = vld [vmem:[#allocation9 + $0xac] sm:$0xf]
          %v1448 = vld [vmem:[#allocation9 + $0xb0] sm:$0xf]
          %v1449 = vld [vmem:[#allocation9 + $0xb4] sm:$0xf]
          %v1450 = vld [vmem:[#allocation9 + $0xb8] sm:$0xf]
          %v1451 = vld [vmem:[#allocation9 + $0xbc] sm:$0xf]
          %v1452 = vld [vmem:[#allocation9 + $0xc0] sm:$0xf]
          %v1453 = vld [vmem:[#allocation9 + $0xc4] sm:$0xf]
          %v1454 = vld [vmem:[#allocation9 + $0xc8] sm:$0xf]
          %v1455 = vld [vmem:[#allocation9 + $0xcc] sm:$0xf]
          %v1456 = vld [vmem:[#allocation9 + $0xd0] sm:$0xf]
          %v1457 = vld [vmem:[#allocation9 + $0xd4] sm:$0xf]
          %v1458 = vld [vmem:[#allocation9 + $0xd8] sm:$0xf]
          %v1459 = vld [vmem:[#allocation9 + $0xdc] sm:$0xf]
          %v1460 = vld [vmem:[#allocation9 + $0xe0] sm:$0xf]
          %v1461 = vld [vmem:[#allocation9 + $0xe4] sm:$0xf]
          %v1462 = vld [vmem:[#allocation9 + $0xe8] sm:$0xf]
          %v1463 = vld [vmem:[#allocation9 + $0xec] sm:$0xf]
          %v1464 = vld [vmem:[#allocation9 + $0xf0] sm:$0xf]
          %v1465 = vld [vmem:[#allocation9 + $0xf4] sm:$0xf]
          %v1466 = vld [vmem:[#allocation9 + $0xf8] sm:$0xf]
          %v1467 = vld [vmem:[#allocation9 + $0xfc] sm:$0xf]
          %v1468 = vld [vmem:[%s5] sm:$0x1]
          %v1470 = vlaneseq
          %v1471 = vshrl.u32 %v1470, 7
          %v1472 = vsub.s32 0, %v1471
          %v1473 = vrot.slane %v1468, %v1472
          %v1539 = vunpack.c.l.b16 %v1404
          %v1540 = vunpack.c.l.b16 %v1405
          %v1541 = vunpack.c.l.b16 %v1406
          %v1542 = vunpack.c.l.b16 %v1407
          %v1543 = vunpack.c.l.b16 %v1408
          %v1544 = vunpack.c.l.b16 %v1409
          %v1545 = vunpack.c.l.b16 %v1410
          %v1546 = vunpack.c.l.b16 %v1411
          %v1547 = vunpack.c.l.b16 %v1412
          %v1548 = vunpack.c.l.b16 %v1413
          %v1549 = vunpack.c.l.b16 %v1414
          %v1550 = vunpack.c.l.b16 %v1415
          %v1551 = vunpack.c.l.b16 %v1416
          %v1552 = vunpack.c.l.b16 %v1417
          %v1553 = vunpack.c.l.b16 %v1418
          %v1554 = vunpack.c.l.b16 %v1419
          %v1555 = vunpack.c.l.b16 %v1420
          %v1556 = vunpack.c.l.b16 %v1421
          %v1557 = vunpack.c.l.b16 %v1422
          %v1558 = vunpack.c.l.b16 %v1423
          %v1559 = vunpack.c.l.b16 %v1424
          %v1560 = vunpack.c.l.b16 %v1425
          %v1561 = vunpack.c.l.b16 %v1426
          %v1562 = vunpack.c.l.b16 %v1427
          %v1563 = vunpack.c.l.b16 %v1428
          %v1564 = vunpack.c.l.b16 %v1429
          %v1565 = vunpack.c.l.b16 %v1430
          %v1566 = vunpack.c.l.b16 %v1431
          %v1567 = vunpack.c.l.b16 %v1432
          %v1568 = vunpack.c.l.b16 %v1433
          %v1569 = vunpack.c.l.b16 %v1434
          %v1570 = vunpack.c.l.b16 %v1435
          %v1571 = vunpack.c.l.b16 %v1436
          %v1572 = vunpack.c.l.b16 %v1437
          %v1573 = vunpack.c.l.b16 %v1438
          %v1574 = vunpack.c.l.b16 %v1439
          %v1575 = vunpack.c.l.b16 %v1440
          %v1576 = vunpack.c.l.b16 %v1441
          %v1577 = vunpack.c.l.b16 %v1442
          %v1578 = vunpack.c.l.b16 %v1443
          %v1579 = vunpack.c.l.b16 %v1444
          %v1580 = vunpack.c.l.b16 %v1445
          %v1581 = vunpack.c.l.b16 %v1446
          %v1582 = vunpack.c.l.b16 %v1447
          %v1583 = vunpack.c.l.b16 %v1448
          %v1584 = vunpack.c.l.b16 %v1449
          %v1585 = vunpack.c.l.b16 %v1450
          %v1586 = vunpack.c.l.b16 %v1451
          %v1587 = vunpack.c.l.b16 %v1452
          %v1588 = vunpack.c.l.b16 %v1453
          %v1589 = vunpack.c.l.b16 %v1454
          %v1590 = vunpack.c.l.b16 %v1455
          %v1591 = vunpack.c.l.b16 %v1456
          %v1592 = vunpack.c.l.b16 %v1457
          %v1593 = vunpack.c.l.b16 %v1458
          %v1594 = vunpack.c.l.b16 %v1459
          %v1595 = vunpack.c.l.b16 %v1460
          %v1596 = vunpack.c.l.b16 %v1461
          %v1597 = vunpack.c.l.b16 %v1462
          %v1598 = vunpack.c.l.b16 %v1463
          %v1599 = vunpack.c.l.b16 %v1464
          %v1600 = vunpack.c.l.b16 %v1465
          %v1601 = vunpack.c.l.b16 %v1466
          %v1602 = vunpack.c.l.b16 %v1467
          %v1603 = vpack.c.b16 %v1540, %v1539
          %v1604 = vpack.c.b16 %v1542, %v1541
          %v1605 = vpack.c.b16 %v1544, %v1543
          %v1606 = vpack.c.b16 %v1546, %v1545
          %v1607 = vpack.c.b16 %v1548, %v1547
          %v1608 = vpack.c.b16 %v1550, %v1549
          %v1609 = vpack.c.b16 %v1552, %v1551
          %v1610 = vpack.c.b16 %v1554, %v1553
          %v1611 = vpack.c.b16 %v1556, %v1555
          %v1612 = vpack.c.b16 %v1558, %v1557
          %v1613 = vpack.c.b16 %v1560, %v1559
          %v1614 = vpack.c.b16 %v1562, %v1561
          %v1615 = vpack.c.b16 %v1564, %v1563
          %v1616 = vpack.c.b16 %v1566, %v1565
          %v1617 = vpack.c.b16 %v1568, %v1567
          %v1618 = vpack.c.b16 %v1570, %v1569
          %v1619 = vpack.c.b16 %v1572, %v1571
          %v1620 = vpack.c.b16 %v1574, %v1573
          %v1621 = vpack.c.b16 %v1576, %v1575
          %v1622 = vpack.c.b16 %v1578, %v1577
          %v1623 = vpack.c.b16 %v1580, %v1579
          %v1624 = vpack.c.b16 %v1582, %v1581
          %v1625 = vpack.c.b16 %v1584, %v1583
          %v1626 = vpack.c.b16 %v1586, %v1585
          %v1627 = vpack.c.b16 %v1588, %v1587
          %v1628 = vpack.c.b16 %v1590, %v1589
          %v1629 = vpack.c.b16 %v1592, %v1591
          %v1630 = vpack.c.b16 %v1594, %v1593
          %v1631 = vpack.c.b16 %v1596, %v1595
          %v1632 = vpack.c.b16 %v1598, %v1597
          %v1633 = vpack.c.b16 %v1600, %v1599
          %v1634 = vpack.c.b16 %v1602, %v1601
          %1667 = vmatprep.subr.bf16.mxu0 0
          %1668 = vmatpush1.bf16.msra.mxu0 %v1610
          %1669 = vmatprep.subr.bf16.mxu0 0
          %1670 = vmatpush1.bf16.msra.mxu0 %v1609
          %1671 = vmatprep.subr.bf16.mxu0 0
          %1672 = vmatpush1.bf16.msra.mxu0 %v1608
          %1673 = vmatprep.subr.bf16.mxu0 0
          %1674 = vmatpush1.bf16.msra.mxu0 %v1607
          %1675 = vmatprep.subr.bf16.mxu0 0
          %1676 = vmatpush1.bf16.msra.mxu0 %v1606
          %1677 = vmatprep.subr.bf16.mxu0 0
          %1678 = vmatpush1.bf16.msra.mxu0 %v1605
          %1679 = vmatprep.subr.bf16.mxu0 0
          %1680 = vmatpush1.bf16.msra.mxu0 %v1604
          %1681 = vmatprep.subr.bf16.mxu0 0
          %1682 = vmatpush1.bf16.msra.mxu0 %v1603
          %1683 = vmatprep.subr.bf16.mxu0 0
          %1684 = vmatpush2.bf16.msra.mxu0 %v1618
          %1685 = vmatprep.subr.bf16.mxu0 0
          %1686 = vmatpush2.bf16.msra.mxu0 %v1617
          %1687 = vmatprep.subr.bf16.mxu0 0
          %1688 = vmatpush2.bf16.msra.mxu0 %v1616
          %1689 = vmatprep.subr.bf16.mxu0 0
          %1690 = vmatpush2.bf16.msra.mxu0 %v1615
          %1691 = vmatprep.subr.bf16.mxu0 0
          %1692 = vmatpush2.bf16.msra.mxu0 %v1614
          %1693 = vmatprep.subr.bf16.mxu0 0
          %1694 = vmatpush2.bf16.msra.mxu0 %v1613
          %1695 = vmatprep.subr.bf16.mxu0 0
          %1696 = vmatpush2.bf16.msra.mxu0 %v1612
          %1697 = vmatprep.subr.bf16.mxu0 0
          %1698 = vmatpush2.bf16.msra.mxu0 %v1611
          %1699 = vmatprep.mubr.bf16.mxu0 %v1401
          %1700 = vmatmul.mubr.bf16.gmra.mxu0 %v1400
          %v1701 = vpop.f32.mrf.mxu0
          %v1702 = vadd.f32 %v1473, %v1701
          %v1703 = vpop.f32.mrf.mxu0
          %v1704 = vpop.f32.mrf.mxu0
          %v1705 = vpop.f32.mrf.mxu0
          %1706 = vdwg.mxu0
          %1707 = vmatprep.subr.bf16.mxu0 0
          %1708 = vmatpush1.bf16.msra.mxu0 %v1626
          %1709 = vmatprep.subr.bf16.mxu0 0
          %1710 = vmatpush1.bf16.msra.mxu0 %v1625
          %1711 = vmatprep.subr.bf16.mxu0 0
          %1712 = vmatpush1.bf16.msra.mxu0 %v1624
          %1713 = vmatprep.subr.bf16.mxu0 0
          %1714 = vmatpush1.bf16.msra.mxu0 %v1623
          %1715 = vmatprep.subr.bf16.mxu0 0
          %1716 = vmatpush1.bf16.msra.mxu0 %v1622
          %1717 = vmatprep.subr.bf16.mxu0 0
          %1718 = vmatpush1.bf16.msra.mxu0 %v1621
          %1719 = vmatprep.subr.bf16.mxu0 0
          %1720 = vmatpush1.bf16.msra.mxu0 %v1620
          %1721 = vmatprep.subr.bf16.mxu0 0
          %1722 = vmatpush1.bf16.msra.mxu0 %v1619
          %1723 = vmatprep.subr.bf16.mxu0 0
          %1724 = vmatpush2.bf16.msra.mxu0 %v1634
          %1725 = vmatprep.subr.bf16.mxu0 0
          %1726 = vmatpush2.bf16.msra.mxu0 %v1633
          %1727 = vmatprep.subr.bf16.mxu0 0
          %1728 = vmatpush2.bf16.msra.mxu0 %v1632
          %1729 = vmatprep.subr.bf16.mxu0 0
          %1730 = vmatpush2.bf16.msra.mxu0 %v1631
          %1731 = vmatprep.subr.bf16.mxu0 0
          %1732 = vmatpush2.bf16.msra.mxu0 %v1630
          %1733 = vmatprep.subr.bf16.mxu0 0
          %1734 = vmatpush2.bf16.msra.mxu0 %v1629
          %1735 = vmatprep.subr.bf16.mxu0 0
          %1736 = vmatpush2.bf16.msra.mxu0 %v1628
          %1737 = vmatprep.subr.bf16.mxu0 0
          %1738 = vmatpush2.bf16.msra.mxu0 %v1627
          %1739 = vmatprep.mubr.bf16.mxu0 %v1403
          %1740 = vmatmul.mubr.bf16.gmra.mxu0 %v1402
          %v1741 = vpop.f32.mrf.mxu0
          %v1742 = vadd.f32 %v1702, %v1741
          %v1743 = vpop.f32.mrf.mxu0
          %v1744 = vpop.f32.mrf.mxu0
          %v1745 = vpop.f32.mrf.mxu0
          %1746 = vdwg.mxu0
          %v1747 = vmax.f32 %v1742, 0.0
          %v1748 = vld [vmem:[%s6] sm:$0x1]
          %v1750 = vlaneseq
          %v1751 = vshrl.u32 %v1750, 7
          %v1752 = vsub.s32 0, %v1751
          %v1753 = vrot.slane %v1748, %v1752
          %v1755 = vmul.f32 %v1747, %v1753
          %1756 = vadd.xlane.f32.xlu0 %v1755
          %v1757 = vpop.xlane.xlu0 %1756
          %v1758 = vld [vmem:[#allocation3] sm:$0x1]
          %v1760 = vlaneseq
          %v1761 = vshrl.u32 %v1760, 7
          %v1762 = vsub.s32 0, %v1761
          %v1763 = vrot.slane %v1758, %v1762
          %v1765 = vadd.f32 %v1757, %v1763
          %v1766 = vxor.u32 %v1765, 2147483648
          %v1767 = vmul.f32 %v1766, 1.442695
          %v1768 = vpow.pop %v1767
          %v1769 = vadd.f32 %v1768, 1.0
          %v1770 = vrcp.pop %v1769
          %v1771 = vmul.f32 1.0, %v1770
          %vm1772 = vcmask 7168
          %1773 = vst.msk [vmem:[%s8] sm:$0xff] %vm1772, %v1771
        $region76: #{tpu_custom_call.1} parent=51 // pred_fallthru
          _
        // Predicated region
        $region77: #{tpu_custom_call.1} parent=51 // pred_check
          %p1774 = pneg %p219
        $region78: #{tpu_custom_call.1} parent=51 // pred_check_branch
          %1776 = sbr.rel (%p1774) target = $region80
        $region79: #{tpu_custom_call.1} parent=51 // pred_region
          _
        $region80: #{tpu_custom_call.1} parent=51 // pred_fallthru
          _
        // Predicated region
        $region81: #{tpu_custom_call.1} parent=51 // pred_check
          %p1777 = pneg %p219
        $region82: #{tpu_custom_call.1} parent=51 // pred_check_branch
          %1779 = sbr.rel (%p1777) target = $region84
        $region83: #{tpu_custom_call.1} parent=51 // pred_region
          _
        $region84: #{tpu_custom_call.1} parent=51 // pred_fallthru
          _
      $region52: #{tpu_custom_call.1} parent=5 // pred_fallthru
        _
      %p1780 = scmp.le.s32.totalorder 2, %s23
      // Predicated region
      $region85: #{tpu_custom_call.1} parent=5 // pred_check
        %p1781 = pneg %p1780
      $region86: #{tpu_custom_call.1} parent=5 // pred_check_branch
        %1783 = sbr.rel (%p1781) target = $region88
      $region87: #{tpu_custom_call.1} parent=5 // pred_region
        %s1784 = ssub.s32 %s23, 2
      $region88: #{tpu_custom_call.1} parent=5 // pred_fallthru
        _
    $region6: #{tpu_custom_call.1} parent=1 // loop_footer
      %s27 = sadd.s32 1, %s23
    $region7: #{tpu_custom_call.1} parent=1 // loop_footer_branch
      %22 = sbr.rel target = $region3
    $region8: #{tpu_custom_call.1} parent=1 // loop_exit
      _
    %1785 = vsyncpa [#allocation5], 1
    %s1786 = scalar_lea.sflag [#allocation5], 1
    %1787 = vsyncpa %s1786, 1
    %1788 = vsyncpa [#allocation7], 1
    %s1789 = scalar_lea.sflag [#allocation7], 1
    %1790 = vsyncpa %s1789, 1
    %1791 = vsyncpa [#allocation10], 1

</llo_original>
